<compile_context>
chip_gen: v6e
topology: v6e:2x2x1
jax: 0.10.0
libtpu: 0.0.40
codegen_flags: <defaults>
</compile_context>

<pallas_src>
import numpy as np
import jax
import jax.numpy as jnp
from jax import lax
from jax.experimental import pallas as pl
from jax.experimental.pallas import tpu as pltpu


# ----------------------------------------------------------------------------
# Wrapper-side weight packing (plain JAX / numpy, one-time cost)
# ----------------------------------------------------------------------------
def _banded_rhs(wt, W_):
    """wt: (3, 3, Cin, Cout) f32, BN scale already folded into output channels.

    Returns the block-banded RHS (3*W*Cin, W*Cout) such that
      out[bh, w*Cout+o] = sum_{dy,w',c} x_dy[bh, w'*Cin+c] * rhs[dy*W*Cin + w'*Cin + c,
                                                                w*Cout + o]
    equals the 3x3 'same' convolution (dx taps live inside the band).
    """
    _, _, Cin_, Cout_ = wt.shape
    band = np.zeros((3, W_, W_), np.float32)          # band[dx, w', w] = [w' == w+dx-1]
    for dx in range(3):
        for w in range(W_):
            wp = w + dx - 1
            if 0 <= wp < W_:
                band[dx, wp, w] = 1.0
    rhs = jnp.einsum("xpw,yxco->ypcwo", band, wt)      # (3, W, Cin, W, Cout)
    return rhs.reshape(3 * W_ * Cin_, W_ * Cout_)


def _center_rhs(wsc, W_):
    """wsc: (Cin, Cout). 1x1 shortcut placed on the un-shifted (dy=1) row group,
    block-diagonal in w -> extra columns for the fused conv1 matmul."""
    Cin_, Cout_ = wsc.shape
    dy_sel = np.array([0.0, 1.0, 0.0], np.float32)
    eye = np.eye(W_, dtype=np.float32)
    rhs = jnp.einsum("y,pw,co->ypcwo", dy_sel, eye, wsc)
    return rhs.reshape(3 * W_ * Cin_, W_ * Cout_)


# ----------------------------------------------------------------------------
# Pallas kernel: Bblk images per grid step, everything fused, lane-dense.
# ----------------------------------------------------------------------------
def _residual_block_kernel(
    x_ref,      # (Bblk, H, W*Cin)        bf16 input (lane-dense)
    rhs1_ref,   # (3*W*Cin, 2*W*Cout)     bf16 [conv1*bn1_scale | shortcut*bnsc_scale]
    b1_ref,     # (1, W*Cout)             f32  bn1 bias (tiled over w)
    rhs2_ref,   # (3*W*Cout, W*Cout)      bf16 conv2*bn2_scale (banded)
    b2_ref,     # (1, W*Cout)             f32  bn2 bias (tiled over w)
    wse1_ref,   # (Cout, Cmid)            f32  SE squeeze
    bse1_ref,   # (1, Cmid)               f32
    wse2_ref,   # (Cmid, Cout)            f32  SE excite
    bse2_ref,   # (1, Cout)               f32
    bsc_ref,    # (1, W*Cout)             f32  shortcut BN bias (tiled over w)
    o_ref,      # (Bblk, H, W*Cout)       f32  lane-dense output block
):
    B, H, WCin = x_ref.shape
    WCout = b1_ref.shape[1]
    Cout = bse2_ref.shape[1]
    W = WCout // Cout

    # ---- conv1 (+ fused 1x1 shortcut), K = 3*W*Cin ---------------------------
    x3 = x_ref[...]                                             # (B, H, WCin) bf16
    zi = jnp.zeros((B, 1, WCin), x3.dtype)
    x_up = jnp.concatenate([zi, x3[:, :-1, :]], axis=1)          # row h -> x[h-1]
    x_dn = jnp.concatenate([x3[:, 1:, :], zi], axis=1)           # row h -> x[h+1]
    X1 = jnp.concatenate([x_up, x3, x_dn], axis=-1).reshape(B * H, 3 * WCin)

    Y = jnp.dot(X1, rhs1_ref[...], preferred_element_type=jnp.float32)  # (B*H, 2*WCout)
    h1 = jnp.maximum(Y[:, :WCout] + b1_ref[...], 0.0)           # BN1 bias + ReLU
    res = Y[:, WCout:] + bsc_ref[...]                           # shortcut + BN_sc bias

    # ---- conv2, K = 3*W*Cout (cast h1 to bf16 ONCE, before its row shifts) ---
    h1b = h1.astype(jnp.bfloat16).reshape(B, H, WCout)
    zo = jnp.zeros((B, 1, WCout), jnp.bfloat16)
    h_up = jnp.concatenate([zo, h1b[:, :-1, :]], axis=1)
    h_dn = jnp.concatenate([h1b[:, 1:, :], zo], axis=1)
    X2 = jnp.concatenate([h_up, h1b, h_dn], axis=-1).reshape(B * H, 3 * WCout)

    h2 = jnp.dot(X2, rhs2_ref[...], preferred_element_type=jnp.float32) + b2_ref[...]

    # ---- Squeeze-Excite: GAP -> 1x1 -> ReLU -> 1x1 -> sigmoid (f32, tiny) ----
    s_rows = jnp.sum(h2.reshape(B, H, WCout), axis=1)            # (B, WCout) lane-dense
    pooled = jnp.sum(s_rows.reshape(B, W, Cout), axis=1) * (1.0 / (H * W))  # (B, Cout)
    se = jnp.dot(pooled, wse1_ref[...], preferred_element_type=jnp.float32)
    se = jnp.maximum(se + bse1_ref[...], 0.0)                    # (B, Cmid)
    se = jnp.dot(se, wse2_ref[...], preferred_element_type=jnp.float32)
    se = jax.nn.sigmoid(se + bse2_ref[...])                      # (B, Cout)

    se_row = jnp.tile(se, (1, W))                                # (B, WCout), [.., w*Cout+o] = se[b,o]
    se_full = jnp.broadcast_to(se_row[:, None, :], (B, H, WCout)).reshape(B * H, WCout)

    out = jnp.maximum(h2 * se_full + res, 0.0)                   # SE scale + residual + ReLU
    o_ref[...] = out.reshape(B, H, WCout).astype(o_ref.dtype)


# ----------------------------------------------------------------------------
# Wrapper
# ----------------------------------------------------------------------------
def residual_block_pallas(x_nchw, p, stride=1, batch_block=None, out_format="NCHW"):
    # TODO(synk): stride != 1 (spatial downsampling) not implemented; the example
    # config exercises the stride=1, Cin != Cout projection-shortcut path.
    assert stride == 1

    N, Cin, H, W = x_nchw.shape
    Cout = p["w1"].shape[0]
    Cmid = p["se1_w"].shape[0]
    WCin, WCout = W * Cin, W * Cout
    # Lane-density note: W*Cin / W*Cout that are multiples of 128 give fully
    # unmasked loads/stores (true here: 128 / 256); other sizes still work but
    # fall back to masked vector ops.
    eps = 1e-5

    # Input: NCHW -> NHWC, bf16 cast fused into the transpose, (W, Cin) flattened
    # to lane-dense W*Cin so the kernel never relayouts the activation.
    x = jnp.transpose(x_nchw, (0, 2, 3, 1)).astype(jnp.bfloat16).reshape(N, H, WCin)

    # Fold BN scales (f32) into conv weight columns, then cast to bf16.
    sc1 = p["bn1_gamma"] / jnp.sqrt(p["bn1_var"] + eps)
    bi1 = p["bn1_beta"] - p["bn1_mean"] * sc1
    sc2 = p["bn2_gamma"] / jnp.sqrt(p["bn2_var"] + eps)
    bi2 = p["bn2_beta"] - p["bn2_mean"] * sc2

    wt1 = jnp.transpose(p["w1"], (2, 3, 1, 0)).astype(jnp.float32) * sc1    # (3,3,Cin,Cout)
    wt2 = jnp.transpose(p["w2"], (2, 3, 1, 0)).astype(jnp.float32) * sc2    # (3,3,Cout,Cout)

    if "sc_w" in p:   # projection shortcut (1x1 conv + BN)
        scs = p["bnsc_gamma"] / jnp.sqrt(p["bnsc_var"] + eps)
        bis = p["bnsc_beta"] - p["bnsc_mean"] * scs
        wsc = jnp.transpose(p["sc_w"][:, :, 0, 0]).astype(jnp.float32) * scs  # (Cin, Cout)
    else:             # identity shortcut (Cin == Cout, stride == 1)
        assert Cin == Cout
        wsc = jnp.eye(Cin, dtype=jnp.float32)
        bis = jnp.zeros((Cout,), jnp.float32)

    rhs1 = jnp.concatenate([_banded_rhs(wt1, W), _center_rhs(wsc, W)],
                           axis=1).astype(jnp.bfloat16)                     # (3*W*Cin, 2*W*Cout)
    rhs2 = _banded_rhs(wt2, W).astype(jnp.bfloat16)                         # (3*W*Cout, W*Cout)

    b1_t = jnp.tile(bi1.astype(jnp.float32), W).reshape(1, WCout)
    b2_t = jnp.tile(bi2.astype(jnp.float32), W).reshape(1, WCout)
    bsc_t = jnp.tile(bis.astype(jnp.float32), W).reshape(1, WCout)

    wse1 = jnp.transpose(p["se1_w"][:, :, 0, 0]).astype(jnp.float32)        # (Cout, Cmid)
    bse1 = p["se1_b"].reshape(1, Cmid).astype(jnp.float32)
    wse2 = jnp.transpose(p["se2_w"][:, :, 0, 0]).astype(jnp.float32)        # (Cmid, Cout)
    bse2 = p["se2_b"].reshape(1, Cout).astype(jnp.float32)

    # batch_block: >=2 steps per v7x core when possible; on v6e (1 TC) prefer
    # batch_block=N (single step) - pass it explicitly if targeting v6e.
    if batch_block is None:
        if N % 4 == 0:
            batch_block = N // 4
        elif N % 2 == 0:
            batch_block = N // 2
        else:
            batch_block = N
    assert N % batch_block == 0
    n_steps = N // batch_block

    out = pl.pallas_call(
        _residual_block_kernel,
        out_shape=jax.ShapeDtypeStruct((N, H, WCout), jnp.float32),
        grid_spec=pltpu.PrefetchScalarGridSpec(
            num_scalar_prefetch=0,
            grid=(n_steps,),
            in_specs=[
                pl.BlockSpec((batch_block, H, WCin), lambda b: (b, 0, 0)),
                pl.BlockSpec((3 * WCin, 2 * WCout), lambda b: (0, 0)),
                pl.BlockSpec((1, WCout), lambda b: (0, 0)),
                pl.BlockSpec((3 * WCout, WCout), lambda b: (0, 0)),
                pl.BlockSpec((1, WCout), lambda b: (0, 0)),
                pl.BlockSpec((Cout, Cmid), lambda b: (0, 0)),
                pl.BlockSpec((1, Cmid), lambda b: (0, 0)),
                pl.BlockSpec((Cmid, Cout), lambda b: (0, 0)),
                pl.BlockSpec((1, Cout), lambda b: (0, 0)),
                pl.BlockSpec((1, WCout), lambda b: (0, 0)),
            ],
            out_specs=pl.BlockSpec((batch_block, H, WCout), lambda b: (b, 0, 0)),
        ),
        compiler_params=pltpu.CompilerParams(
            dimension_semantics=("parallel",),
        ),
    )(x, rhs1, b1_t, rhs2, b2_t, wse1, bse1, wse2, bse2, bsc_t)

    out = out.reshape(N, H, W, Cout)
    if out_format == "NHWC":       # skip the extra HBM pass if the consumer allows
        return out
    return jnp.transpose(out, (0, 3, 1, 2))                     # NHWC -> NCHW


# ----------------------------------------------------------------------------
# Pure-JAX reference (f32 end-to-end) for correctness check
# ----------------------------------------------------------------------------
def residual_block_ref(x_nchw, p):
    x = jnp.transpose(x_nchw, (0, 2, 3, 1)).astype(jnp.float32)

    def conv3x3(inp, w_oihw):
        w = jnp.transpose(w_oihw, (2, 3, 1, 0))                  # HWIO
        return lax.conv_general_dilated(
            inp, w, (1, 1), ((1, 1), (1, 1)),
            dimension_numbers=("NHWC", "HWIO", "NHWC"))

    def bn(v, g, b, m, var):
        return (v - m) / jnp.sqrt(var + 1e-5) * g + b

    out = jax.nn.relu(bn(conv3x3(x, p["w1"]),
                         p["bn1_gamma"], p["bn1_beta"], p["bn1_mean"], p["bn1_var"]))
    out = bn(conv3x3(out, p["w2"]),
             p["bn2_gamma"], p["bn2_beta"], p["bn2_mean"], p["bn2_var"])
    pooled = jnp.mean(out, axis=(1, 2), keepdims=True)           # (N,1,1,Cout)
    se = jax.nn.relu(jnp.einsum("nhwc,mc->nhwm", pooled, p["se1_w"][:, :, 0, 0])
                     + p["se1_b"])
    se = jax.nn.sigmoid(jnp.einsum("nhwm,cm->nhwc", se, p["se2_w"][:, :, 0, 0])
                        + p["se2_b"])
    out = out * se
    res = bn(jnp.einsum("nhwc,oc->nhwo", x, p["sc_w"][:, :, 0, 0]),
             p["bnsc_gamma"], p["bnsc_beta"], p["bnsc_mean"], p["bnsc_var"])
    out = jax.nn.relu(out + res)
    return jnp.transpose(out, (0, 3, 1, 2))


# ----------------------------------------------------------------------------
if __name__ == "__main__":
    N, Cin, Cout, H, W = 4, 16, 32, 8, 8
    Cmid = Cout // 16

    key = jax.random.PRNGKey(0)
    ks = jax.random.split(key, 24)

    def nrm(k, shape, scale=0.1):
        return scale * jax.random.normal(k, shape, jnp.float32)

    params = {
        "w1": nrm(ks[0], (Cout, Cin, 3, 3)),
        "bn1_gamma": 1.0 + nrm(ks[1], (Cout,)),
        "bn1_beta": nrm(ks[2], (Cout,)),
        "bn1_mean": nrm(ks[3], (Cout,)),
        "bn1_var": jnp.abs(1.0 + nrm(ks[4], (Cout,))),
        "w2": nrm(ks[5], (Cout, Cout, 3, 3)),
        "bn2_gamma": 1.0 + nrm(ks[6], (Cout,)),
        "bn2_beta": nrm(ks[7], (Cout,)),
        "bn2_mean": nrm(ks[8], (Cout,)),
        "bn2_var": jnp.abs(1.0 + nrm(ks[9], (Cout,))),
        "se1_w": nrm(ks[10], (Cmid, Cout, 1, 1)),
        "se1_b": nrm(ks[11], (Cmid,)),
        "se2_w": nrm(ks[12], (Cout, Cmid, 1, 1)),
        "se2_b": nrm(ks[13], (Cout,)),
        "sc_w": nrm(ks[14], (Cout, Cin, 1, 1)),
        "bnsc_gamma": 1.0 + nrm(ks[15], (Cout,)),
        "bnsc_beta": nrm(ks[16], (Cout,)),
        "bnsc_mean": nrm(ks[17], (Cout,)),
        "bnsc_var": jnp.abs(1.0 + nrm(ks[18], (Cout,))),
    }

    x = jax.random.normal(ks[19], (N, Cin, H, W), jnp.float32)    # NCHW input

    y = residual_block_pallas(x, params)
    y = jax.block_until_ready(y)

    y_ref = residual_block_ref(x, params)
    max_err = float(jnp.max(jnp.abs(y - y_ref)))
    assert y.shape == (N, Cout, H, W)
    # bf16 MXU inputs (f32 accumulate, BN scales folded in f32 before the bf16
    # cast) vs a pure-f32 reference -> loose tolerance.
    assert jnp.allclose(y, y_ref, atol=6e-2, rtol=6e-2), f"max_err={max_err}"
    print("KERNEL_OK")
</pallas_src>

<mosaic_0001>
module attributes {stable_mosaic.version = 11 : i64} {
  func.func @_residual_block_kernel(%arg0: i32, %arg1: memref<1x8x128xbf16, #tpu.memory_space<vmem>>, %arg2: memref<384x512xbf16, #tpu.memory_space<vmem>>, %arg3: memref<1x256xf32, #tpu.memory_space<vmem>>, %arg4: memref<768x256xbf16, #tpu.memory_space<vmem>>, %arg5: memref<1x256xf32, #tpu.memory_space<vmem>>, %arg6: memref<32x2xf32, #tpu.memory_space<vmem>>, %arg7: memref<1x2xf32, #tpu.memory_space<vmem>>, %arg8: memref<2x32xf32, #tpu.memory_space<vmem>>, %arg9: memref<1x32xf32, #tpu.memory_space<vmem>>, %arg10: memref<1x256xf32, #tpu.memory_space<vmem>>, %arg11: memref<1x8x256xf32, #tpu.memory_space<vmem>>) attributes {dimension_semantics = [#tpu.dimension_semantics<parallel>], iteration_bounds = array<i64: 4>, scalar_prefetch = 0 : i64, scratch_operands = 0 : i64, tpu.core_type = #tpu.core_type<tc>, window_params = [{transform_indices = @transform_0, window_bounds = array<i64: 1, 8, 128>}, {pipeline_mode = #tpu.pipeline_mode<synchronous>, transform_indices = @transform_1, window_bounds = array<i64: 384, 512>}, {pipeline_mode = #tpu.pipeline_mode<synchronous>, transform_indices = @transform_2, window_bounds = array<i64: 1, 256>}, {pipeline_mode = #tpu.pipeline_mode<synchronous>, transform_indices = @transform_3, window_bounds = array<i64: 768, 256>}, {pipeline_mode = #tpu.pipeline_mode<synchronous>, transform_indices = @transform_4, window_bounds = array<i64: 1, 256>}, {pipeline_mode = #tpu.pipeline_mode<synchronous>, transform_indices = @transform_5, window_bounds = array<i64: 32, 2>}, {pipeline_mode = #tpu.pipeline_mode<synchronous>, transform_indices = @transform_6, window_bounds = array<i64: 1, 2>}, {pipeline_mode = #tpu.pipeline_mode<synchronous>, transform_indices = @transform_7, window_bounds = array<i64: 2, 32>}, {pipeline_mode = #tpu.pipeline_mode<synchronous>, transform_indices = @transform_8, window_bounds = array<i64: 1, 32>}, {pipeline_mode = #tpu.pipeline_mode<synchronous>, transform_indices = @transform_9, window_bounds = array<i64: 1, 256>}, {transform_indices = @transform_10, window_bounds = array<i64: 1, 8, 256>}]} {
    %c0 = arith.constant 0 : index
    %c0_0 = arith.constant 0 : index
    %c0_1 = arith.constant 0 : index
    %0 = vector.load %arg1[%c0, %c0_0, %c0_1] : memref<1x8x128xbf16, #tpu.memory_space<vmem>>, vector<1x8x128xbf16>
    %cst = arith.constant 0.000000e+00 : bf16
    %1 = vector.broadcast %cst : bf16 to vector<1x1x128xbf16>
    %2 = vector.extract_strided_slice %0 {offsets = [0, 0, 0], sizes = [1, 7, 128], strides = [1, 1, 1]} : vector<1x8x128xbf16> to vector<1x7x128xbf16>
    %3 = tpu.concatenate %1, %2 in 1 : vector<1x1x128xbf16>, vector<1x7x128xbf16> -> vector<1x8x128xbf16>
    %4 = vector.extract_strided_slice %0 {offsets = [0, 1, 0], sizes = [1, 7, 128], strides = [1, 1, 1]} : vector<1x8x128xbf16> to vector<1x7x128xbf16>
    %5 = tpu.concatenate %4, %1 in 1 : vector<1x7x128xbf16>, vector<1x1x128xbf16> -> vector<1x8x128xbf16>
    %6 = tpu.concatenate %3, %0, %5 in 2 : vector<1x8x128xbf16>, vector<1x8x128xbf16>, vector<1x8x128xbf16> -> vector<1x8x384xbf16>
    %7 = vector.shape_cast %6 : vector<1x8x384xbf16> to vector<8x384xbf16>
    %c0_2 = arith.constant 0 : index
    %c0_3 = arith.constant 0 : index
    %8 = vector.load %arg2[%c0_2, %c0_3] : memref<384x512xbf16, #tpu.memory_space<vmem>>, vector<384x512xbf16>
    %cst_4 = arith.constant dense<0.000000e+00> : vector<8x512xf32>
    %9 = tpu.matmul %7, %8, %cst_4 {dimension_numbers = #tpu.dot_dimension_numbers<[1], [0], [0], [1], [0, 0, 1, 1], [], []>} : vector<8x384xbf16>, vector<384x512xbf16>, vector<8x512xf32> -> vector<8x512xf32>
    %10 = vector.extract_strided_slice %9 {offsets = [0, 0], sizes = [8, 256], strides = [1, 1]} : vector<8x512xf32> to vector<8x256xf32>
    %c0_5 = arith.constant 0 : index
    %c0_6 = arith.constant 0 : index
    %11 = vector.load %arg3[%c0_5, %c0_6] : memref<1x256xf32, #tpu.memory_space<vmem>>, vector<1x256xf32>
    %12 = vector.broadcast %11 : vector<1x256xf32> to vector<8x256xf32>
    %13 = arith.addf %10, %12 : vector<8x256xf32>
    %cst_7 = arith.constant 0.000000e+00 : f32
    %14 = vector.broadcast %cst_7 : f32 to vector<8x256xf32>
    %15 = arith.maximumf %13, %14 : vector<8x256xf32>
    %16 = vector.extract_strided_slice %9 {offsets = [0, 256], sizes = [8, 256], strides = [1, 1]} : vector<8x512xf32> to vector<8x256xf32>
    %c0_8 = arith.constant 0 : index
    %c0_9 = arith.constant 0 : index
    %17 = vector.load %arg10[%c0_8, %c0_9] : memref<1x256xf32, #tpu.memory_space<vmem>>, vector<1x256xf32>
    %18 = vector.broadcast %17 : vector<1x256xf32> to vector<8x256xf32>
    %19 = arith.addf %16, %18 : vector<8x256xf32>
    %20 = arith.truncf %15 : vector<8x256xf32> to vector<8x256xbf16>
    %21 = vector.shape_cast %20 : vector<8x256xbf16> to vector<1x8x256xbf16>
    %cst_10 = arith.constant 0.000000e+00 : bf16
    %22 = vector.broadcast %cst_10 : bf16 to vector<1x1x256xbf16>
    %23 = vector.extract_strided_slice %21 {offsets = [0, 0, 0], sizes = [1, 7, 256], strides = [1, 1, 1]} : vector<1x8x256xbf16> to vector<1x7x256xbf16>
    %24 = tpu.concatenate %22, %23 in 1 : vector<1x1x256xbf16>, vector<1x7x256xbf16> -> vector<1x8x256xbf16>
    %25 = vector.extract_strided_slice %21 {offsets = [0, 1, 0], sizes = [1, 7, 256], strides = [1, 1, 1]} : vector<1x8x256xbf16> to vector<1x7x256xbf16>
    %26 = tpu.concatenate %25, %22 in 1 : vector<1x7x256xbf16>, vector<1x1x256xbf16> -> vector<1x8x256xbf16>
    %27 = tpu.concatenate %24, %21, %26 in 2 : vector<1x8x256xbf16>, vector<1x8x256xbf16>, vector<1x8x256xbf16> -> vector<1x8x768xbf16>
    %28 = vector.shape_cast %27 : vector<1x8x768xbf16> to vector<8x768xbf16>
    %c0_11 = arith.constant 0 : index
    %c0_12 = arith.constant 0 : index
    %29 = vector.load %arg4[%c0_11, %c0_12] : memref<768x256xbf16, #tpu.memory_space<vmem>>, vector<768x256xbf16>
    %cst_13 = arith.constant dense<0.000000e+00> : vector<8x256xf32>
    %30 = tpu.matmul %28, %29, %cst_13 {dimension_numbers = #tpu.dot_dimension_numbers<[1], [0], [0], [1], [0, 0, 1, 1], [], []>} : vector<8x768xbf16>, vector<768x256xbf16>, vector<8x256xf32> -> vector<8x256xf32>
    %c0_14 = arith.constant 0 : index
    %c0_15 = arith.constant 0 : index
    %31 = vector.load %arg5[%c0_14, %c0_15] : memref<1x256xf32, #tpu.memory_space<vmem>>, vector<1x256xf32>
    %32 = vector.broadcast %31 : vector<1x256xf32> to vector<8x256xf32>
    %33 = arith.addf %30, %32 : vector<8x256xf32>
    %34 = vector.shape_cast %33 : vector<8x256xf32> to vector<1x8x256xf32>
    %cst_16 = arith.constant dense<0.000000e+00> : vector<1x256xf32>
    %35 = vector.multi_reduction <add>, %34, %cst_16 [1] : vector<1x8x256xf32> to vector<1x256xf32>
    %36 = vector.shape_cast %35 : vector<1x256xf32> to vector<1x8x32xf32>
    %cst_17 = arith.constant dense<0.000000e+00> : vector<1x32xf32>
    %37 = vector.multi_reduction <add>, %36, %cst_17 [1] : vector<1x8x32xf32> to vector<1x32xf32>
    %cst_18 = arith.constant 1.562500e-02 : f32
    %38 = vector.broadcast %cst_18 : f32 to vector<1x32xf32>
    %39 = arith.mulf %37, %38 : vector<1x32xf32>
    %c0_19 = arith.constant 0 : index
    %c0_20 = arith.constant 0 : index
    %40 = vector.load %arg6[%c0_19, %c0_20] : memref<32x2xf32, #tpu.memory_space<vmem>>, vector<32x2xf32>
    %cst_21 = arith.constant dense<0.000000e+00> : vector<1x2xf32>
    %41 = tpu.matmul %39, %40, %cst_21 {dimension_numbers = #tpu.dot_dimension_numbers<[1], [0], [0], [1], [0, 0, 1, 1], [], []>} : vector<1x32xf32>, vector<32x2xf32>, vector<1x2xf32> -> vector<1x2xf32>
    %c0_22 = arith.constant 0 : index
    %c0_23 = arith.constant 0 : index
    %42 = vector.load %arg7[%c0_22, %c0_23] : memref<1x2xf32, #tpu.memory_space<vmem>>, vector<1x2xf32>
    %43 = arith.addf %41, %42 : vector<1x2xf32>
    %cst_24 = arith.constant 0.000000e+00 : f32
    %44 = vector.broadcast %cst_24 : f32 to vector<1x2xf32>
    %45 = arith.maximumf %43, %44 : vector<1x2xf32>
    %c0_25 = arith.constant 0 : index
    %c0_26 = arith.constant 0 : index
    %46 = vector.load %arg8[%c0_25, %c0_26] : memref<2x32xf32, #tpu.memory_space<vmem>>, vector<2x32xf32>
    %cst_27 = arith.constant dense<0.000000e+00> : vector<1x32xf32>
    %47 = tpu.matmul %45, %46, %cst_27 {dimension_numbers = #tpu.dot_dimension_numbers<[1], [0], [0], [1], [0, 0, 1, 1], [], []>} : vector<1x2xf32>, vector<2x32xf32>, vector<1x32xf32> -> vector<1x32xf32>
    %c0_28 = arith.constant 0 : index
    %c0_29 = arith.constant 0 : index
    %48 = vector.load %arg9[%c0_28, %c0_29] : memref<1x32xf32, #tpu.memory_space<vmem>>, vector<1x32xf32>
    %49 = arith.addf %47, %48 : vector<1x32xf32>
    %50 = arith.negf %49 : vector<1x32xf32>
    %51 = math.exp %50 : vector<1x32xf32>
    %cst_30 = arith.constant 1.000000e+00 : f32
    %52 = vector.broadcast %cst_30 : f32 to vector<1x32xf32>
    %53 = arith.addf %52, %51 : vector<1x32xf32>
    %54 = arith.divf %52, %53 : vector<1x32xf32>
    %55 = tpu.concatenate %54, %54, %54, %54, %54, %54, %54, %54 in 1 : vector<1x32xf32>, vector<1x32xf32>, vector<1x32xf32>, vector<1x32xf32>, vector<1x32xf32>, vector<1x32xf32>, vector<1x32xf32>, vector<1x32xf32> -> vector<1x256xf32>
    %56 = vector.shape_cast %55 : vector<1x256xf32> to vector<1x1x256xf32>
    %57 = vector.shape_cast %56 : vector<1x1x256xf32> to vector<1x1x256xf32>
    %58 = vector.broadcast %57 : vector<1x1x256xf32> to vector<1x8x256xf32>
    %59 = vector.shape_cast %58 : vector<1x8x256xf32> to vector<8x256xf32>
    %60 = arith.mulf %33, %59 : vector<8x256xf32>
    %61 = arith.addf %60, %19 : vector<8x256xf32>
    %cst_31 = arith.constant 0.000000e+00 : f32
    %62 = vector.broadcast %cst_31 : f32 to vector<8x256xf32>
    %63 = arith.maximumf %61, %62 : vector<8x256xf32>
    %64 = vector.shape_cast %63 : vector<8x256xf32> to vector<1x8x256xf32>
    %c0_32 = arith.constant 0 : index
    %c0_33 = arith.constant 0 : index
    %c0_34 = arith.constant 0 : index
    %65 = vector.load %arg11[%c0_32, %c0_33, %c0_34] : memref<1x8x256xf32, #tpu.memory_space<vmem>>, vector<1x8x256xf32>
    tpu.vector_store %arg11[%c0_32, %c0_33, %c0_34], %64 {strides = array<i32>} : memref<1x8x256xf32, #tpu.memory_space<vmem>>, vector<1x8x256xf32>,
    return
  }
  func.func @transform_0(%arg0: i32) -> (i32, i32, i32) {
    %c0_i32 = arith.constant 0 : i32
    %c0_i32_0 = arith.constant 0 : i32
    %c0_i32_1 = arith.constant 0 : i32
    return %arg0, %c0_i32, %c0_i32_0 : i32, i32, i32
  }
  func.func @transform_1(%arg0: i32) -> (i32, i32) {
    %c0_i32 = arith.constant 0 : i32
    %c0_i32_0 = arith.constant 0 : i32
    %c0_i32_1 = arith.constant 0 : i32
    return %c0_i32, %c0_i32_0 : i32, i32
  }
  func.func @transform_2(%arg0: i32) -> (i32, i32) {
    %c0_i32 = arith.constant 0 : i32
    %c0_i32_0 = arith.constant 0 : i32
    %c0_i32_1 = arith.constant 0 : i32
    return %c0_i32, %c0_i32_0 : i32, i32
  }
  func.func @transform_3(%arg0: i32) -> (i32, i32) {
    %c0_i32 = arith.constant 0 : i32
    %c0_i32_0 = arith.constant 0 : i32
    %c0_i32_1 = arith.constant 0 : i32
    return %c0_i32, %c0_i32_0 : i32, i32
  }
  func.func @transform_4(%arg0: i32) -> (i32, i32) {
    %c0_i32 = arith.constant 0 : i32
    %c0_i32_0 = arith.constant 0 : i32
    %c0_i32_1 = arith.constant 0 : i32
    return %c0_i32, %c0_i32_0 : i32, i32
  }
  func.func @transform_5(%arg0: i32) -> (i32, i32) {
    %c0_i32 = arith.constant 0 : i32
    %c0_i32_0 = arith.constant 0 : i32
    %c0_i32_1 = arith.constant 0 : i32
    return %c0_i32, %c0_i32_0 : i32, i32
  }
  func.func @transform_6(%arg0: i32) -> (i32, i32) {
    %c0_i32 = arith.constant 0 : i32
    %c0_i32_0 = arith.constant 0 : i32
    %c0_i32_1 = arith.constant 0 : i32
    return %c0_i32, %c0_i32_0 : i32, i32
  }
  func.func @transform_7(%arg0: i32) -> (i32, i32) {
    %c0_i32 = arith.constant 0 : i32
    %c0_i32_0 = arith.constant 0 : i32
    %c0_i32_1 = arith.constant 0 : i32
    return %c0_i32, %c0_i32_0 : i32, i32
  }
  func.func @transform_8(%arg0: i32) -> (i32, i32) {
    %c0_i32 = arith.constant 0 : i32
    %c0_i32_0 = arith.constant 0 : i32
    %c0_i32_1 = arith.constant 0 : i32
    return %c0_i32, %c0_i32_0 : i32, i32
  }
  func.func @transform_9(%arg0: i32) -> (i32, i32) {
    %c0_i32 = arith.constant 0 : i32
    %c0_i32_0 = arith.constant 0 : i32
    %c0_i32_1 = arith.constant 0 : i32
    return %c0_i32, %c0_i32_0 : i32, i32
  }
  func.func @transform_10(%arg0: i32) -> (i32, i32, i32) {
    %c0_i32 = arith.constant 0 : i32
    %c0_i32_0 = arith.constant 0 : i32
    %c0_i32_1 = arith.constant 0 : i32
    return %arg0, %c0_i32, %c0_i32_0 : i32, i32, i32
  }
}

</mosaic_0001>

<llo_original>
// kernel: tpu_custom_call.1
$region0: #{tpu_custom_call.1}
  #allocation0 [shape = 'u32[]', space=smem, size = 0x4, offset = 0x4, fixed_abs, tag = 'smem constant byte address 0x4 - core index']
  #allocation1 [shape = 'u32[144,128]{1,0:T(1,128)}', space=vmem, size = 0x12000, scoped, tag = 'internal scratch']
  %s0 = inlined_call_operand.vmem [shape: bf16[4,8,128], index: 0, kind: input, shape index: {}]
  %s1 = inlined_call_operand.hbm [shape: bf16[384,512], index: 1, kind: input, shape index: {}]
  %s2 = inlined_call_operand.vmem [shape: f32[1,256], index: 2, kind: input, shape index: {}]
  %s3 = inlined_call_operand.hbm [shape: bf16[768,256], index: 3, kind: input, shape index: {}]
  %s4 = inlined_call_operand.vmem [shape: f32[1,256], index: 4, kind: input, shape index: {}]
  %s5 = inlined_call_operand.vmem [shape: f32[32,2], index: 5, kind: input, shape index: {}]
  %s6 = inlined_call_operand.vmem [shape: f32[1,2], index: 6, kind: input, shape index: {}]
  %s7 = inlined_call_operand.vmem [shape: f32[2,32], index: 7, kind: input, shape index: {}]
  %s8 = inlined_call_operand.vmem [shape: f32[1,32], index: 8, kind: input, shape index: {}]
  %s9 = inlined_call_operand.vmem [shape: f32[1,256], index: 9, kind: input, shape index: {}]
  %s10 = inlined_call_operand.hbm [shape: f32[4,8,256], index: 10, kind: output, shape index: {}]
  %s11 = sld [smem:[#allocation0]]
  $region81: #{tpu_custom_call.1} parent=0
    _
  %s13 = ssub.s32 1, %s11
  %s14 = scalar_select 0, %s13, %s11
  $region1: #{tpu_custom_call.1} parent=0
    #allocation2 [shape = 'u8[393216]{0}', space=vmem, size = 0x60000, scoped, tag = 'input window, operand 1, single buffered']
    #allocation3 [shape = 's32[2]{0}', space=sflag, size = 0x8, scoped, tag = 'scoped memory for tpu_custom_call.1']
    #allocation4 [shape = 's32[2]{0}', space=sflag, size = 0x8, scoped, tag = 'scoped memory for tpu_custom_call.1']
    #allocation5 [shape = 'u8[393216]{0}', space=vmem, size = 0x60000, scoped, tag = 'input window, operand 3, single buffered']
    #allocation6 [shape = 's32[1]{0}', space=sflag, size = 0x4, scoped, tag = 'scoped memory for tpu_custom_call.1']
    #allocation7 [shape = 'u8[16384]{0}', space=vmem, size = 0x4000, scoped, tag = 'output window, operand 0']
    %15 = vsyncpa [#allocation3], 0
    %16 = vsyncpa [#allocation6], 0
    %17 = vsyncpa [#allocation4], 0
    %s18 = scalar_lea.sflag [#allocation4], 1
    %19 = vsyncpa %s18, 0
    loop: start=0, step=1, limit=6
    $region2: #{tpu_custom_call.1} parent=1 // loop_pre_header
      _
    $region3: #{tpu_custom_call.1} parent=1 // loop_header
      %s21 = sphi 0, %s25
      %p22 = scmp.ge.s32.totalorder %s21, 6
      %s31 = sphi 0, %s33
      %s34 = sphi 0, %s31
      %s35 = sphi 0, %s34
      %s51 = sphi 0, %s35
      %s55 = sphi 0, %s55
      %s57 = sphi 0, %s55
      %s58 = sphi 0, %s57
      %s72 = sphi 0, %s58
      %s76 = sphi 0, %s76
      %s78 = sphi 0, %s76
      %s79 = sphi 0, %s78
      %s93 = sphi 0, %s79
      %s97 = sphi 0, %s97
      %s99 = sphi 0, %s97
      %s100 = sphi 0, %s99
      %s114 = sphi 0, %s100
      %s118 = sphi 0, %s118
      %s120 = sphi 0, %s118
      %s121 = sphi 0, %s120
      %s135 = sphi 0, %s121
      %s139 = sphi 0, %s139
      %s141 = sphi 0, %s139
      %s142 = sphi 0, %s141
      %s156 = sphi 0, %s142
      %s160 = sphi 0, %s160
      %s162 = sphi 0, %s160
      %s163 = sphi 0, %s162
      %s177 = sphi 0, %s163
      %s181 = sphi 0, %s181
      %s183 = sphi 0, %s181
      %s184 = sphi 0, %s183
      %s198 = sphi 0, %s184
      %s202 = sphi 0, %s202
      %s204 = sphi 0, %s202
      %s205 = sphi 0, %s204
      %s219 = sphi 0, %s205
      %s223 = sphi 0, %s223
      %s225 = sphi 0, %s223
      %s226 = sphi 0, %s225
      %s240 = sphi 0, %s226
      %s246 = sphi 0, %s248
      %s249 = sphi 0, %s246
      %s250 = sphi 0, %s249
      %s266 = sphi 0, %s250
    $region4: #{tpu_custom_call.1} parent=1 // loop_header_branch
      %24 = sbr.rel (%p22) target = $region8
    $region5: #{tpu_custom_call.1} parent=1 // loop_body
      %s26 = ssub.s32 %s21, 1
      %s27 = ssub.s32 %s21, 2
      %s28 = sadd.s32 %s21, 1
      %s29 = ssub.s32 %s21, %s28
      %p30 = scmp.eq.s32.totalorder %s29, 0
      %s32 = sadd.s32 %s31, 1
      %s33 = scalar_select %p30, %s31, %s32
      %p36 = pneg %p30
      %p37 = scmp.eq.s32.totalorder %s21, 3
      %p38 = por %p36, %p37
      %p39 = scmp.ne.s32.totalorder %s31, %s34
      %p40 = scmp.eq.s32.totalorder %s21, 0
      %p41 = por %p39, %p40
      %p42 = scmp.ne.s32.totalorder %s31, %s34
      %p43 = scmp.eq.s32.totalorder %s26, 3
      %p44 = por %p42, %p43
      %p45 = scmp.ne.s32.totalorder %s34, %s35
      %p46 = scmp.eq.s32.totalorder %s26, 0
      %p47 = por %p45, %p46
      %p48 = scmp.ne.s32.totalorder %s34, %s35
      %p49 = scmp.eq.s32.totalorder %s27, 3
      %p50 = por %p48, %p49
      %p52 = scmp.ne.s32.totalorder %s35, %s51
      %p53 = scmp.eq.s32.totalorder %s27, 0
      %p54 = por %p52, %p53
      %s56 = sadd.s32 %s55, 1
      %p59 = scmp.eq.s32.totalorder %s21, 3
      %p60 = scmp.ne.s32.totalorder %s55, %s57
      %p61 = scmp.eq.s32.totalorder %s21, 0
      %p62 = por %p60, %p61
      %p63 = scmp.ne.s32.totalorder %s55, %s57
      %p64 = scmp.eq.s32.totalorder %s26, 3
      %p65 = por %p63, %p64
      %p66 = scmp.ne.s32.totalorder %s57, %s58
      %p67 = scmp.eq.s32.totalorder %s26, 0
      %p68 = por %p66, %p67
      %p69 = scmp.ne.s32.totalorder %s57, %s58
      %p70 = scmp.eq.s32.totalorder %s27, 3
      %p71 = por %p69, %p70
      %p73 = scmp.ne.s32.totalorder %s58, %s72
      %p74 = scmp.eq.s32.totalorder %s27, 0
      %p75 = por %p73, %p74
      %s77 = sadd.s32 %s76, 1
      %p80 = scmp.eq.s32.totalorder %s21, 3
      %p81 = scmp.ne.s32.totalorder %s76, %s78
      %p82 = scmp.eq.s32.totalorder %s21, 0
      %p83 = por %p81, %p82
      %p84 = scmp.ne.s32.totalorder %s76, %s78
      %p85 = scmp.eq.s32.totalorder %s26, 3
      %p86 = por %p84, %p85
      %p87 = scmp.ne.s32.totalorder %s78, %s79
      %p88 = scmp.eq.s32.totalorder %s26, 0
      %p89 = por %p87, %p88
      %p90 = scmp.ne.s32.totalorder %s78, %s79
      %p91 = scmp.eq.s32.totalorder %s27, 3
      %p92 = por %p90, %p91
      %p94 = scmp.ne.s32.totalorder %s79, %s93
      %p95 = scmp.eq.s32.totalorder %s27, 0
      %p96 = por %p94, %p95
      %s98 = sadd.s32 %s97, 1
      %p101 = scmp.eq.s32.totalorder %s21, 3
      %p102 = scmp.ne.s32.totalorder %s97, %s99
      %p103 = scmp.eq.s32.totalorder %s21, 0
      %p104 = por %p102, %p103
      %p105 = scmp.ne.s32.totalorder %s97, %s99
      %p106 = scmp.eq.s32.totalorder %s26, 3
      %p107 = por %p105, %p106
      %p108 = scmp.ne.s32.totalorder %s99, %s100
      %p109 = scmp.eq.s32.totalorder %s26, 0
      %p110 = por %p108, %p109
      %p111 = scmp.ne.s32.totalorder %s99, %s100
      %p112 = scmp.eq.s32.totalorder %s27, 3
      %p113 = por %p111, %p112
      %p115 = scmp.ne.s32.totalorder %s100, %s114
      %p116 = scmp.eq.s32.totalorder %s27, 0
      %p117 = por %p115, %p116
      %s119 = sadd.s32 %s118, 1
      %p122 = scmp.eq.s32.totalorder %s21, 3
      %p123 = scmp.ne.s32.totalorder %s118, %s120
      %p124 = scmp.eq.s32.totalorder %s21, 0
      %p125 = por %p123, %p124
      %p126 = scmp.ne.s32.totalorder %s118, %s120
      %p127 = scmp.eq.s32.totalorder %s26, 3
      %p128 = por %p126, %p127
      %p129 = scmp.ne.s32.totalorder %s120, %s121
      %p130 = scmp.eq.s32.totalorder %s26, 0
      %p131 = por %p129, %p130
      %p132 = scmp.ne.s32.totalorder %s120, %s121
      %p133 = scmp.eq.s32.totalorder %s27, 3
      %p134 = por %p132, %p133
      %p136 = scmp.ne.s32.totalorder %s121, %s135
      %p137 = scmp.eq.s32.totalorder %s27, 0
      %p138 = por %p136, %p137
      %s140 = sadd.s32 %s139, 1
      %p143 = scmp.eq.s32.totalorder %s21, 3
      %p144 = scmp.ne.s32.totalorder %s139, %s141
      %p145 = scmp.eq.s32.totalorder %s21, 0
      %p146 = por %p144, %p145
      %p147 = scmp.ne.s32.totalorder %s139, %s141
      %p148 = scmp.eq.s32.totalorder %s26, 3
      %p149 = por %p147, %p148
      %p150 = scmp.ne.s32.totalorder %s141, %s142
      %p151 = scmp.eq.s32.totalorder %s26, 0
      %p152 = por %p150, %p151
      %p153 = scmp.ne.s32.totalorder %s141, %s142
      %p154 = scmp.eq.s32.totalorder %s27, 3
      %p155 = por %p153, %p154
      %p157 = scmp.ne.s32.totalorder %s142, %s156
      %p158 = scmp.eq.s32.totalorder %s27, 0
      %p159 = por %p157, %p158
      %s161 = sadd.s32 %s160, 1
      %p164 = scmp.eq.s32.totalorder %s21, 3
      %p165 = scmp.ne.s32.totalorder %s160, %s162
      %p166 = scmp.eq.s32.totalorder %s21, 0
      %p167 = por %p165, %p166
      %p168 = scmp.ne.s32.totalorder %s160, %s162
      %p169 = scmp.eq.s32.totalorder %s26, 3
      %p170 = por %p168, %p169
      %p171 = scmp.ne.s32.totalorder %s162, %s163
      %p172 = scmp.eq.s32.totalorder %s26, 0
      %p173 = por %p171, %p172
      %p174 = scmp.ne.s32.totalorder %s162, %s163
      %p175 = scmp.eq.s32.totalorder %s27, 3
      %p176 = por %p174, %p175
      %p178 = scmp.ne.s32.totalorder %s163, %s177
      %p179 = scmp.eq.s32.totalorder %s27, 0
      %p180 = por %p178, %p179
      %s182 = sadd.s32 %s181, 1
      %p185 = scmp.eq.s32.totalorder %s21, 3
      %p186 = scmp.ne.s32.totalorder %s181, %s183
      %p187 = scmp.eq.s32.totalorder %s21, 0
      %p188 = por %p186, %p187
      %p189 = scmp.ne.s32.totalorder %s181, %s183
      %p190 = scmp.eq.s32.totalorder %s26, 3
      %p191 = por %p189, %p190
      %p192 = scmp.ne.s32.totalorder %s183, %s184
      %p193 = scmp.eq.s32.totalorder %s26, 0
      %p194 = por %p192, %p193
      %p195 = scmp.ne.s32.totalorder %s183, %s184
      %p196 = scmp.eq.s32.totalorder %s27, 3
      %p197 = por %p195, %p196
      %p199 = scmp.ne.s32.totalorder %s184, %s198
      %p200 = scmp.eq.s32.totalorder %s27, 0
      %p201 = por %p199, %p200
      %s203 = sadd.s32 %s202, 1
      %p206 = scmp.eq.s32.totalorder %s21, 3
      %p207 = scmp.ne.s32.totalorder %s202, %s204
      %p208 = scmp.eq.s32.totalorder %s21, 0
      %p209 = por %p207, %p208
      %p210 = scmp.ne.s32.totalorder %s202, %s204
      %p211 = scmp.eq.s32.totalorder %s26, 3
      %p212 = por %p210, %p211
      %p213 = scmp.ne.s32.totalorder %s204, %s205
      %p214 = scmp.eq.s32.totalorder %s26, 0
      %p215 = por %p213, %p214
      %p216 = scmp.ne.s32.totalorder %s204, %s205
      %p217 = scmp.eq.s32.totalorder %s27, 3
      %p218 = por %p216, %p217
      %p220 = scmp.ne.s32.totalorder %s205, %s219
      %p221 = scmp.eq.s32.totalorder %s27, 0
      %p222 = por %p220, %p221
      %s224 = sadd.s32 %s223, 1
      %p227 = scmp.eq.s32.totalorder %s21, 3
      %p228 = scmp.ne.s32.totalorder %s223, %s225
      %p229 = scmp.eq.s32.totalorder %s21, 0
      %p230 = por %p228, %p229
      %p231 = scmp.ne.s32.totalorder %s223, %s225
      %p232 = scmp.eq.s32.totalorder %s26, 3
      %p233 = por %p231, %p232
      %p234 = scmp.ne.s32.totalorder %s225, %s226
      %p235 = scmp.eq.s32.totalorder %s26, 0
      %p236 = por %p234, %p235
      %p237 = scmp.ne.s32.totalorder %s225, %s226
      %p238 = scmp.eq.s32.totalorder %s27, 3
      %p239 = por %p237, %p238
      %p241 = scmp.ne.s32.totalorder %s226, %s240
      %p242 = scmp.eq.s32.totalorder %s27, 0
      %p243 = por %p241, %p242
      %s244 = ssub.s32 %s21, %s28
      %p245 = scmp.eq.s32.totalorder %s244, 0
      %s247 = sadd.s32 %s246, 1
      %s248 = scalar_select %p245, %s246, %s247
      %p251 = pneg %p245
      %p252 = scmp.eq.s32.totalorder %s21, 3
      %p253 = por %p251, %p252
      %p254 = scmp.ne.s32.totalorder %s246, %s249
      %p255 = scmp.eq.s32.totalorder %s21, 0
      %p256 = por %p254, %p255
      %p257 = scmp.ne.s32.totalorder %s246, %s249
      %p258 = scmp.eq.s32.totalorder %s26, 3
      %p259 = por %p257, %p258
      %p260 = scmp.ne.s32.totalorder %s249, %s250
      %p261 = scmp.eq.s32.totalorder %s26, 0
      %p262 = por %p260, %p261
      %p263 = scmp.ne.s32.totalorder %s249, %s250
      %p264 = scmp.eq.s32.totalorder %s27, 3
      %p265 = por %p263, %p264
      %p267 = scmp.ne.s32.totalorder %s250, %s266
      %p268 = scmp.eq.s32.totalorder %s27, 0
      %p269 = por %p267, %p268
      %p270 = scmp.le.s32.totalorder 1, %s21
      %p271 = scmp.lt.s32.totalorder %s21, 5
      %p272 = pnand %p270, %p271
      %p273 = pneg %p272
      // Predicated region
      $region9: #{tpu_custom_call.1} parent=5 // pred_check
        _
      $region10: #{tpu_custom_call.1} parent=5 // pred_check_branch
        %275 = sbr.rel (%p272) target = $region12
      $region11: #{tpu_custom_call.1} parent=5 // pred_region
        %s276 = ssub.s32 %s21, 1
        // Predicated region
        $region13: #{tpu_custom_call.1} parent=11 // pred_check
          %p277 = pneg %p68
        $region14: #{tpu_custom_call.1} parent=11 // pred_check_branch
          %279 = sbr.rel (%p277) target = $region16
        $region15: #{tpu_custom_call.1} parent=11 // pred_region
          %s281 = ssub.s32 12288, 12288
          %282 = vsyncadd [#allocation3], %s281
          %s283 = sshll.u32 [#allocation2], 4
          %s284 = int_to_ptr.vmem [resolvable:$true] %s283
          %289 = dma.hbm_to_vmem [thread:$0]  %s1, 12288, %s284, [#allocation3], 256, 256, 16
        $region16: #{tpu_custom_call.1} parent=11 // pred_fallthru
          _
        // Predicated region
        $region17: #{tpu_custom_call.1} parent=11 // pred_check
          %p290 = pneg %p89
        $region18: #{tpu_custom_call.1} parent=11 // pred_check_branch
          %292 = sbr.rel (%p290) target = $region20
        $region19: #{tpu_custom_call.1} parent=11 // pred_region
          _
        $region20: #{tpu_custom_call.1} parent=11 // pred_fallthru
          _
        // Predicated region
        $region21: #{tpu_custom_call.1} parent=11 // pred_check
          %p293 = pneg %p110
        $region22: #{tpu_custom_call.1} parent=11 // pred_check_branch
          %295 = sbr.rel (%p293) target = $region24
        $region23: #{tpu_custom_call.1} parent=11 // pred_region
          %s297 = ssub.s32 12288, 12288
          %298 = vsyncadd [#allocation6], %s297
          %s299 = sshll.u32 [#allocation5], 4
          %s300 = int_to_ptr.vmem [resolvable:$true] %s299
          %305 = dma.hbm_to_vmem [thread:$0]  %s3, 12288, %s300, [#allocation6], 128, 128, 8
        $region24: #{tpu_custom_call.1} parent=11 // pred_fallthru
          _
        // Predicated region
        $region25: #{tpu_custom_call.1} parent=11 // pred_check
          %p306 = pneg %p131
        $region26: #{tpu_custom_call.1} parent=11 // pred_check_branch
          %308 = sbr.rel (%p306) target = $region28
        $region27: #{tpu_custom_call.1} parent=11 // pred_region
          _
        $region28: #{tpu_custom_call.1} parent=11 // pred_fallthru
          _
        // Predicated region
        $region29: #{tpu_custom_call.1} parent=11 // pred_check
          %p309 = pneg %p152
        $region30: #{tpu_custom_call.1} parent=11 // pred_check_branch
          %311 = sbr.rel (%p309) target = $region32
        $region31: #{tpu_custom_call.1} parent=11 // pred_region
          _
        $region32: #{tpu_custom_call.1} parent=11 // pred_fallthru
          _
        // Predicated region
        $region33: #{tpu_custom_call.1} parent=11 // pred_check
          %p312 = pneg %p173
        $region34: #{tpu_custom_call.1} parent=11 // pred_check_branch
          %314 = sbr.rel (%p312) target = $region36
        $region35: #{tpu_custom_call.1} parent=11 // pred_region
          _
        $region36: #{tpu_custom_call.1} parent=11 // pred_fallthru
          _
        // Predicated region
        $region37: #{tpu_custom_call.1} parent=11 // pred_check
          %p315 = pneg %p194
        $region38: #{tpu_custom_call.1} parent=11 // pred_check_branch
          %317 = sbr.rel (%p315) target = $region40
        $region39: #{tpu_custom_call.1} parent=11 // pred_region
          _
        $region40: #{tpu_custom_call.1} parent=11 // pred_fallthru
          _
        // Predicated region
        $region41: #{tpu_custom_call.1} parent=11 // pred_check
          %p318 = pneg %p215
        $region42: #{tpu_custom_call.1} parent=11 // pred_check_branch
          %320 = sbr.rel (%p318) target = $region44
        $region43: #{tpu_custom_call.1} parent=11 // pred_region
          _
        $region44: #{tpu_custom_call.1} parent=11 // pred_fallthru
          _
        // Predicated region
        $region45: #{tpu_custom_call.1} parent=11 // pred_check
          %p321 = pneg %p236
        $region46: #{tpu_custom_call.1} parent=11 // pred_check_branch
          %323 = sbr.rel (%p321) target = $region48
        $region47: #{tpu_custom_call.1} parent=11 // pred_region
          _
        $region48: #{tpu_custom_call.1} parent=11 // pred_fallthru
          _
      $region12: #{tpu_custom_call.1} parent=5 // pred_fallthru
        _
      %p324 = scmp.lt.s32.totalorder %s21, 4
      // Predicated region
      $region49: #{tpu_custom_call.1} parent=5 // pred_check
        %p325 = pneg %p324
      $region50: #{tpu_custom_call.1} parent=5 // pred_check_branch
        %327 = sbr.rel (%p325) target = $region52
      $region51: #{tpu_custom_call.1} parent=5 // pred_region
        // Predicated region
        $region53: #{tpu_custom_call.1} parent=51 // pred_check
          %p328 = pneg %p41
        $region54: #{tpu_custom_call.1} parent=51 // pred_check_branch
          %330 = sbr.rel (%p328) target = $region56
        $region55: #{tpu_custom_call.1} parent=51 // pred_region
          %p331 = scmp.lt.s32.totalorder %s21, 3
          %s332 = scalar_select %p331, %s21, 3
          %s333 = smul.addr %s332, 4
          %s334 = scalar_lea.vmem %s0, %s333
        $region56: #{tpu_custom_call.1} parent=51 // pred_fallthru
          _
      $region52: #{tpu_custom_call.1} parent=5 // pred_fallthru
        _
      %p335 = scmp.le.s32.totalorder 1, %s21
      %p336 = scmp.lt.s32.totalorder %s21, 5
      %p337 = pnand %p335, %p336
      %p338 = pneg %p337
      // Predicated region
      $region57: #{tpu_custom_call.1} parent=5 // pred_check
        _
      $region58: #{tpu_custom_call.1} parent=5 // pred_check_branch
        %340 = sbr.rel (%p337) target = $region60
      $region59: #{tpu_custom_call.1} parent=5 // pred_region
        %s341 = ssub.s32 %s21, 1
        // Predicated region
        $region61: #{tpu_custom_call.1} parent=59 // pred_check
          %p342 = pneg %p68
        $region62: #{tpu_custom_call.1} parent=59 // pred_check_branch
          %344 = sbr.rel (%p342) target = $region64
        $region63: #{tpu_custom_call.1} parent=59 // pred_region
          %345 = dma.done [#allocation3], 12288
        $region64: #{tpu_custom_call.1} parent=59 // pred_fallthru
          _
        // Predicated region
        $region65: #{tpu_custom_call.1} parent=59 // pred_check
          %p346 = pneg %p110
        $region66: #{tpu_custom_call.1} parent=59 // pred_check_branch
          %348 = sbr.rel (%p346) target = $region68
        $region67: #{tpu_custom_call.1} parent=59 // pred_region
          %349 = dma.done [#allocation6], 12288
        $region68: #{tpu_custom_call.1} parent=59 // pred_fallthru
          _
        %p350 = scmp.lt.s32.totalorder %s26, 3
        %s351 = scalar_select %p350, %s26, 3
        %s352 = smul.addr %s351, 4
        %s353 = scalar_lea.vmem %s0, %s352
        %p354 = pneg %p47
        %p355 = pneg %p44
        %p356 = pneg %p68
        %p357 = pneg %p65
        %p358 = pneg %p89
        %p359 = pneg %p86
        %p360 = pneg %p110
        %p361 = pneg %p107
        %p362 = pneg %p131
        %p363 = pneg %p128
        %p364 = pneg %p152
        %p365 = pneg %p149
        %p366 = pneg %p173
        %p367 = pneg %p170
        %p368 = pneg %p194
        %p369 = pneg %p191
        %p370 = pneg %p215
        %p371 = pneg %p212
        %p372 = pneg %p236
        %p373 = pneg %p233
        %p374 = pneg %p262
        %p375 = pneg %p259
        %s376 = sand.u32 %s249, 1
        %s377 = scalar_lea.sflag [#allocation4], %s376
        %s378 = sand.u32 %s249, 1
        %s379 = smul.addr %s378, 16
        %s380 = scalar_lea.vmem [#allocation7], %s379
        %p381 = scmp.lt.s32.totalorder %s26, 3
        %s382 = scalar_select %p381, %s26, 3
        %s383 = smul.addr %s382, 4
        %s384 = scalar_lea.vmem %s0, %s383
        %v386 = vld [vmem:[%s384] sm:$0xf]
        %v388 = vunpack.c.l.b16 %v386
        %v389 = vpack.c.b16 %v388, %v388
        %v391 = vshrl.u32 %v389, 16
        %v393 = vrot.slane %v391, 7
        %v394 = vshll.u32 %v389, 16
        %v396 = vor.u32 %v393, %v394
        %vm398 = vcmask 1040384
        %vm399 = vsmask.f32 256
        %vm400 = vmand %vm398, %vm399
        %v401 = vsel %vm400, 0, %v396
        %v402 = vrot.slane %v394, 1
        %v403 = vor.u32 %v391, %v402
        %vm405 = vcmask 1043456
        %vm406 = vsmask.f32 3328
        %vm407 = vmand %vm405, %vm406
        %v408 = vsel %vm407, %v403, 0
        %v409 = vld [vmem:[#allocation2] sm:$0xff]
        %v410 = vld [vmem:[#allocation2 + $0x8] sm:$0xff]
        %v411 = vld [vmem:[#allocation2 + $0x10] sm:$0xff]
        %v412 = vld [vmem:[#allocation2 + $0x18] sm:$0xff]
        %v413 = vld [vmem:[#allocation2 + $0x20] sm:$0xff]
        %v414 = vld [vmem:[#allocation2 + $0x28] sm:$0xff]
        %v415 = vld [vmem:[#allocation2 + $0x30] sm:$0xff]
        %v416 = vld [vmem:[#allocation2 + $0x38] sm:$0xff]
        %v417 = vld [vmem:[#allocation2 + $0x40] sm:$0xff]
        %v418 = vld [vmem:[#allocation2 + $0x48] sm:$0xff]
        %v419 = vld [vmem:[#allocation2 + $0x50] sm:$0xff]
        %v420 = vld [vmem:[#allocation2 + $0x58] sm:$0xff]
        %v421 = vld [vmem:[#allocation2 + $0x60] sm:$0xff]
        %v422 = vld [vmem:[#allocation2 + $0x68] sm:$0xff]
        %v423 = vld [vmem:[#allocation2 + $0x70] sm:$0xff]
        %v424 = vld [vmem:[#allocation2 + $0x78] sm:$0xff]
        %v425 = vld [vmem:[#allocation2 + $0x80] sm:$0xff]
        %v426 = vld [vmem:[#allocation2 + $0x88] sm:$0xff]
        %v427 = vld [vmem:[#allocation2 + $0x90] sm:$0xff]
        %v428 = vld [vmem:[#allocation2 + $0x98] sm:$0xff]
        %v429 = vld [vmem:[#allocation2 + $0xa0] sm:$0xff]
        %v430 = vld [vmem:[#allocation2 + $0xa8] sm:$0xff]
        %v431 = vld [vmem:[#allocation2 + $0xb0] sm:$0xff]
        %v432 = vld [vmem:[#allocation2 + $0xb8] sm:$0xff]
        %v433 = vld [vmem:[#allocation2 + $0xc0] sm:$0xff]
        %v434 = vld [vmem:[#allocation2 + $0xc8] sm:$0xff]
        %v435 = vld [vmem:[#allocation2 + $0xd0] sm:$0xff]
        %v436 = vld [vmem:[#allocation2 + $0xd8] sm:$0xff]
        %v437 = vld [vmem:[#allocation2 + $0xe0] sm:$0xff]
        %v438 = vld [vmem:[#allocation2 + $0xe8] sm:$0xff]
        %v439 = vld [vmem:[#allocation2 + $0xf0] sm:$0xff]
        %v440 = vld [vmem:[#allocation2 + $0xf8] sm:$0xff]
        %v441 = vld [vmem:[#allocation2 + $0x100] sm:$0xff]
        %v442 = vld [vmem:[#allocation2 + $0x108] sm:$0xff]
        %v443 = vld [vmem:[#allocation2 + $0x110] sm:$0xff]
        %v444 = vld [vmem:[#allocation2 + $0x118] sm:$0xff]
        %v445 = vld [vmem:[#allocation2 + $0x120] sm:$0xff]
        %v446 = vld [vmem:[#allocation2 + $0x128] sm:$0xff]
        %v447 = vld [vmem:[#allocation2 + $0x130] sm:$0xff]
        %v448 = vld [vmem:[#allocation2 + $0x138] sm:$0xff]
        %v449 = vld [vmem:[#allocation2 + $0x140] sm:$0xff]
        %v450 = vld [vmem:[#allocation2 + $0x148] sm:$0xff]
        %v451 = vld [vmem:[#allocation2 + $0x150] sm:$0xff]
        %v452 = vld [vmem:[#allocation2 + $0x158] sm:$0xff]
        %v453 = vld [vmem:[#allocation2 + $0x160] sm:$0xff]
        %v454 = vld [vmem:[#allocation2 + $0x168] sm:$0xff]
        %v455 = vld [vmem:[#allocation2 + $0x170] sm:$0xff]
        %v456 = vld [vmem:[#allocation2 + $0x178] sm:$0xff]
        %v457 = vld [vmem:[#allocation2 + $0x180] sm:$0xff]
        %v458 = vld [vmem:[#allocation2 + $0x188] sm:$0xff]
        %v459 = vld [vmem:[#allocation2 + $0x190] sm:$0xff]
        %v460 = vld [vmem:[#allocation2 + $0x198] sm:$0xff]
        %v461 = vld [vmem:[#allocation2 + $0x1a0] sm:$0xff]
        %v462 = vld [vmem:[#allocation2 + $0x1a8] sm:$0xff]
        %v463 = vld [vmem:[#allocation2 + $0x1b0] sm:$0xff]
        %v464 = vld [vmem:[#allocation2 + $0x1b8] sm:$0xff]
        %v465 = vld [vmem:[#allocation2 + $0x1c0] sm:$0xff]
        %v466 = vld [vmem:[#allocation2 + $0x1c8] sm:$0xff]
        %v467 = vld [vmem:[#allocation2 + $0x1d0] sm:$0xff]
        %v468 = vld [vmem:[#allocation2 + $0x1d8] sm:$0xff]
        %v469 = vld [vmem:[#allocation2 + $0x1e0] sm:$0xff]
        %v470 = vld [vmem:[#allocation2 + $0x1e8] sm:$0xff]
        %v471 = vld [vmem:[#allocation2 + $0x1f0] sm:$0xff]
        %v472 = vld [vmem:[#allocation2 + $0x1f8] sm:$0xff]
        %v473 = vld [vmem:[#allocation2 + $0x200] sm:$0xff]
        %v474 = vld [vmem:[#allocation2 + $0x208] sm:$0xff]
        %v475 = vld [vmem:[#allocation2 + $0x210] sm:$0xff]
        %v476 = vld [vmem:[#allocation2 + $0x218] sm:$0xff]
        %v477 = vld [vmem:[#allocation2 + $0x220] sm:$0xff]
        %v478 = vld [vmem:[#allocation2 + $0x228] sm:$0xff]
        %v479 = vld [vmem:[#allocation2 + $0x230] sm:$0xff]
        %v480 = vld [vmem:[#allocation2 + $0x238] sm:$0xff]
        %v481 = vld [vmem:[#allocation2 + $0x240] sm:$0xff]
        %v482 = vld [vmem:[#allocation2 + $0x248] sm:$0xff]
        %v483 = vld [vmem:[#allocation2 + $0x250] sm:$0xff]
        %v484 = vld [vmem:[#allocation2 + $0x258] sm:$0xff]
        %v485 = vld [vmem:[#allocation2 + $0x260] sm:$0xff]
        %v486 = vld [vmem:[#allocation2 + $0x268] sm:$0xff]
        %v487 = vld [vmem:[#allocation2 + $0x270] sm:$0xff]
        %v488 = vld [vmem:[#allocation2 + $0x278] sm:$0xff]
        %v489 = vld [vmem:[#allocation2 + $0x280] sm:$0xff]
        %v490 = vld [vmem:[#allocation2 + $0x288] sm:$0xff]
        %v491 = vld [vmem:[#allocation2 + $0x290] sm:$0xff]
        %v492 = vld [vmem:[#allocation2 + $0x298] sm:$0xff]
        %v493 = vld [vmem:[#allocation2 + $0x2a0] sm:$0xff]
        %v494 = vld [vmem:[#allocation2 + $0x2a8] sm:$0xff]
        %v495 = vld [vmem:[#allocation2 + $0x2b0] sm:$0xff]
        %v496 = vld [vmem:[#allocation2 + $0x2b8] sm:$0xff]
        %v497 = vld [vmem:[#allocation2 + $0x2c0] sm:$0xff]
        %v498 = vld [vmem:[#allocation2 + $0x2c8] sm:$0xff]
        %v499 = vld [vmem:[#allocation2 + $0x2d0] sm:$0xff]
        %v500 = vld [vmem:[#allocation2 + $0x2d8] sm:$0xff]
        %v501 = vld [vmem:[#allocation2 + $0x2e0] sm:$0xff]
        %v502 = vld [vmem:[#allocation2 + $0x2e8] sm:$0xff]
        %v503 = vld [vmem:[#allocation2 + $0x2f0] sm:$0xff]
        %v504 = vld [vmem:[#allocation2 + $0x2f8] sm:$0xff]
        %v601 = vunpack.c.l.b16 %v409
        %v602 = vunpack.c.h.b16 %v409
        %v603 = vunpack.c.l.b16 %v410
        %v604 = vunpack.c.h.b16 %v410
        %v605 = vunpack.c.l.b16 %v411
        %v606 = vunpack.c.h.b16 %v411
        %v607 = vunpack.c.l.b16 %v412
        %v608 = vunpack.c.h.b16 %v412
        %v609 = vunpack.c.l.b16 %v413
        %v610 = vunpack.c.h.b16 %v413
        %v611 = vunpack.c.l.b16 %v414
        %v612 = vunpack.c.h.b16 %v414
        %v613 = vunpack.c.l.b16 %v415
        %v614 = vunpack.c.h.b16 %v415
        %v615 = vunpack.c.l.b16 %v416
        %v616 = vunpack.c.h.b16 %v416
        %v617 = vunpack.c.l.b16 %v417
        %v618 = vunpack.c.h.b16 %v417
        %v619 = vunpack.c.l.b16 %v418
        %v620 = vunpack.c.h.b16 %v418
        %v621 = vunpack.c.l.b16 %v419
        %v622 = vunpack.c.h.b16 %v419
        %v623 = vunpack.c.l.b16 %v420
        %v624 = vunpack.c.h.b16 %v420
        %v625 = vunpack.c.l.b16 %v421
        %v626 = vunpack.c.h.b16 %v421
        %v627 = vunpack.c.l.b16 %v422
        %v628 = vunpack.c.h.b16 %v422
        %v629 = vunpack.c.l.b16 %v423
        %v630 = vunpack.c.h.b16 %v423
        %v631 = vunpack.c.l.b16 %v424
        %v632 = vunpack.c.h.b16 %v424
        %v633 = vunpack.c.l.b16 %v425
        %v634 = vunpack.c.h.b16 %v425
        %v635 = vunpack.c.l.b16 %v426
        %v636 = vunpack.c.h.b16 %v426
        %v637 = vunpack.c.l.b16 %v427
        %v638 = vunpack.c.h.b16 %v427
        %v639 = vunpack.c.l.b16 %v428
        %v640 = vunpack.c.h.b16 %v428
        %v641 = vunpack.c.l.b16 %v429
        %v642 = vunpack.c.h.b16 %v429
        %v643 = vunpack.c.l.b16 %v430
        %v644 = vunpack.c.h.b16 %v430
        %v645 = vunpack.c.l.b16 %v431
        %v646 = vunpack.c.h.b16 %v431
        %v647 = vunpack.c.l.b16 %v432
        %v648 = vunpack.c.h.b16 %v432
        %v649 = vunpack.c.l.b16 %v433
        %v650 = vunpack.c.h.b16 %v433
        %v651 = vunpack.c.l.b16 %v434
        %v652 = vunpack.c.h.b16 %v434
        %v653 = vunpack.c.l.b16 %v435
        %v654 = vunpack.c.h.b16 %v435
        %v655 = vunpack.c.l.b16 %v436
        %v656 = vunpack.c.h.b16 %v436
        %v657 = vunpack.c.l.b16 %v437
        %v658 = vunpack.c.h.b16 %v437
        %v659 = vunpack.c.l.b16 %v438
        %v660 = vunpack.c.h.b16 %v438
        %v661 = vunpack.c.l.b16 %v439
        %v662 = vunpack.c.h.b16 %v439
        %v663 = vunpack.c.l.b16 %v440
        %v664 = vunpack.c.h.b16 %v440
        %v665 = vunpack.c.l.b16 %v441
        %v666 = vunpack.c.h.b16 %v441
        %v667 = vunpack.c.l.b16 %v442
        %v668 = vunpack.c.h.b16 %v442
        %v669 = vunpack.c.l.b16 %v443
        %v670 = vunpack.c.h.b16 %v443
        %v671 = vunpack.c.l.b16 %v444
        %v672 = vunpack.c.h.b16 %v444
        %v673 = vunpack.c.l.b16 %v445
        %v674 = vunpack.c.h.b16 %v445
        %v675 = vunpack.c.l.b16 %v446
        %v676 = vunpack.c.h.b16 %v446
        %v677 = vunpack.c.l.b16 %v447
        %v678 = vunpack.c.h.b16 %v447
        %v679 = vunpack.c.l.b16 %v448
        %v680 = vunpack.c.h.b16 %v448
        %v681 = vunpack.c.l.b16 %v449
        %v682 = vunpack.c.h.b16 %v449
        %v683 = vunpack.c.l.b16 %v450
        %v684 = vunpack.c.h.b16 %v450
        %v685 = vunpack.c.l.b16 %v451
        %v686 = vunpack.c.h.b16 %v451
        %v687 = vunpack.c.l.b16 %v452
        %v688 = vunpack.c.h.b16 %v452
        %v689 = vunpack.c.l.b16 %v453
        %v690 = vunpack.c.h.b16 %v453
        %v691 = vunpack.c.l.b16 %v454
        %v692 = vunpack.c.h.b16 %v454
        %v693 = vunpack.c.l.b16 %v455
        %v694 = vunpack.c.h.b16 %v455
        %v695 = vunpack.c.l.b16 %v456
        %v696 = vunpack.c.h.b16 %v456
        %v697 = vunpack.c.l.b16 %v457
        %v698 = vunpack.c.h.b16 %v457
        %v699 = vunpack.c.l.b16 %v458
        %v700 = vunpack.c.h.b16 %v458
        %v701 = vunpack.c.l.b16 %v459
        %v702 = vunpack.c.h.b16 %v459
        %v703 = vunpack.c.l.b16 %v460
        %v704 = vunpack.c.h.b16 %v460
        %v705 = vunpack.c.l.b16 %v461
        %v706 = vunpack.c.h.b16 %v461
        %v707 = vunpack.c.l.b16 %v462
        %v708 = vunpack.c.h.b16 %v462
        %v709 = vunpack.c.l.b16 %v463
        %v710 = vunpack.c.h.b16 %v463
        %v711 = vunpack.c.l.b16 %v464
        %v712 = vunpack.c.h.b16 %v464
        %v713 = vunpack.c.l.b16 %v465
        %v714 = vunpack.c.h.b16 %v465
        %v715 = vunpack.c.l.b16 %v466
        %v716 = vunpack.c.h.b16 %v466
        %v717 = vunpack.c.l.b16 %v467
        %v718 = vunpack.c.h.b16 %v467
        %v719 = vunpack.c.l.b16 %v468
        %v720 = vunpack.c.h.b16 %v468
        %v721 = vunpack.c.l.b16 %v469
        %v722 = vunpack.c.h.b16 %v469
        %v723 = vunpack.c.l.b16 %v470
        %v724 = vunpack.c.h.b16 %v470
        %v725 = vunpack.c.l.b16 %v471
        %v726 = vunpack.c.h.b16 %v471
        %v727 = vunpack.c.l.b16 %v472
        %v728 = vunpack.c.h.b16 %v472
        %v729 = vunpack.c.l.b16 %v473
        %v730 = vunpack.c.h.b16 %v473
        %v731 = vunpack.c.l.b16 %v474
        %v732 = vunpack.c.h.b16 %v474
        %v733 = vunpack.c.l.b16 %v475
        %v734 = vunpack.c.h.b16 %v475
        %v735 = vunpack.c.l.b16 %v476
        %v736 = vunpack.c.h.b16 %v476
        %v737 = vunpack.c.l.b16 %v477
        %v738 = vunpack.c.h.b16 %v477
        %v739 = vunpack.c.l.b16 %v478
        %v740 = vunpack.c.h.b16 %v478
        %v741 = vunpack.c.l.b16 %v479
        %v742 = vunpack.c.h.b16 %v479
        %v743 = vunpack.c.l.b16 %v480
        %v744 = vunpack.c.h.b16 %v480
        %v745 = vunpack.c.l.b16 %v481
        %v746 = vunpack.c.h.b16 %v481
        %v747 = vunpack.c.l.b16 %v482
        %v748 = vunpack.c.h.b16 %v482
        %v749 = vunpack.c.l.b16 %v483
        %v750 = vunpack.c.h.b16 %v483
        %v751 = vunpack.c.l.b16 %v484
        %v752 = vunpack.c.h.b16 %v484
        %v753 = vunpack.c.l.b16 %v485
        %v754 = vunpack.c.h.b16 %v485
        %v755 = vunpack.c.l.b16 %v486
        %v756 = vunpack.c.h.b16 %v486
        %v757 = vunpack.c.l.b16 %v487
        %v758 = vunpack.c.h.b16 %v487
        %v759 = vunpack.c.l.b16 %v488
        %v760 = vunpack.c.h.b16 %v488
        %v761 = vunpack.c.l.b16 %v489
        %v762 = vunpack.c.h.b16 %v489
        %v763 = vunpack.c.l.b16 %v490
        %v764 = vunpack.c.h.b16 %v490
        %v765 = vunpack.c.l.b16 %v491
        %v766 = vunpack.c.h.b16 %v491
        %v767 = vunpack.c.l.b16 %v492
        %v768 = vunpack.c.h.b16 %v492
        %v769 = vunpack.c.l.b16 %v493
        %v770 = vunpack.c.h.b16 %v493
        %v771 = vunpack.c.l.b16 %v494
        %v772 = vunpack.c.h.b16 %v494
        %v773 = vunpack.c.l.b16 %v495
        %v774 = vunpack.c.h.b16 %v495
        %v775 = vunpack.c.l.b16 %v496
        %v776 = vunpack.c.h.b16 %v496
        %v777 = vunpack.c.l.b16 %v497
        %v778 = vunpack.c.h.b16 %v497
        %v779 = vunpack.c.l.b16 %v498
        %v780 = vunpack.c.h.b16 %v498
        %v781 = vunpack.c.l.b16 %v499
        %v782 = vunpack.c.h.b16 %v499
        %v783 = vunpack.c.l.b16 %v500
        %v784 = vunpack.c.h.b16 %v500
        %v785 = vunpack.c.l.b16 %v501
        %v786 = vunpack.c.h.b16 %v501
        %v787 = vunpack.c.l.b16 %v502
        %v788 = vunpack.c.h.b16 %v502
        %v789 = vunpack.c.l.b16 %v503
        %v790 = vunpack.c.h.b16 %v503
        %v791 = vunpack.c.l.b16 %v504
        %v792 = vunpack.c.h.b16 %v504
        %v793 = vpack.c.b16 %v605, %v601
        %v794 = vpack.c.b16 %v606, %v602
        %v795 = vpack.c.b16 %v607, %v603
        %v796 = vpack.c.b16 %v608, %v604
        %v797 = vpack.c.b16 %v613, %v609
        %v798 = vpack.c.b16 %v614, %v610
        %v799 = vpack.c.b16 %v615, %v611
        %v800 = vpack.c.b16 %v616, %v612
        %v801 = vpack.c.b16 %v621, %v617
        %v802 = vpack.c.b16 %v622, %v618
        %v803 = vpack.c.b16 %v623, %v619
        %v804 = vpack.c.b16 %v624, %v620
        %v805 = vpack.c.b16 %v629, %v625
        %v806 = vpack.c.b16 %v630, %v626
        %v807 = vpack.c.b16 %v631, %v627
        %v808 = vpack.c.b16 %v632, %v628
        %v809 = vpack.c.b16 %v637, %v633
        %v810 = vpack.c.b16 %v638, %v634
        %v811 = vpack.c.b16 %v639, %v635
        %v812 = vpack.c.b16 %v640, %v636
        %v813 = vpack.c.b16 %v645, %v641
        %v814 = vpack.c.b16 %v646, %v642
        %v815 = vpack.c.b16 %v647, %v643
        %v816 = vpack.c.b16 %v648, %v644
        %v817 = vpack.c.b16 %v653, %v649
        %v818 = vpack.c.b16 %v654, %v650
        %v819 = vpack.c.b16 %v655, %v651
        %v820 = vpack.c.b16 %v656, %v652
        %v821 = vpack.c.b16 %v661, %v657
        %v822 = vpack.c.b16 %v662, %v658
        %v823 = vpack.c.b16 %v663, %v659
        %v824 = vpack.c.b16 %v664, %v660
        %v825 = vpack.c.b16 %v669, %v665
        %v826 = vpack.c.b16 %v670, %v666
        %v827 = vpack.c.b16 %v671, %v667
        %v828 = vpack.c.b16 %v672, %v668
        %v829 = vpack.c.b16 %v677, %v673
        %v830 = vpack.c.b16 %v678, %v674
        %v831 = vpack.c.b16 %v679, %v675
        %v832 = vpack.c.b16 %v680, %v676
        %v833 = vpack.c.b16 %v685, %v681
        %v834 = vpack.c.b16 %v686, %v682
        %v835 = vpack.c.b16 %v687, %v683
        %v836 = vpack.c.b16 %v688, %v684
        %v837 = vpack.c.b16 %v693, %v689
        %v838 = vpack.c.b16 %v694, %v690
        %v839 = vpack.c.b16 %v695, %v691
        %v840 = vpack.c.b16 %v696, %v692
        %v841 = vpack.c.b16 %v701, %v697
        %v842 = vpack.c.b16 %v702, %v698
        %v843 = vpack.c.b16 %v703, %v699
        %v844 = vpack.c.b16 %v704, %v700
        %v845 = vpack.c.b16 %v709, %v705
        %v846 = vpack.c.b16 %v710, %v706
        %v847 = vpack.c.b16 %v711, %v707
        %v848 = vpack.c.b16 %v712, %v708
        %v849 = vpack.c.b16 %v717, %v713
        %v850 = vpack.c.b16 %v718, %v714
        %v851 = vpack.c.b16 %v719, %v715
        %v852 = vpack.c.b16 %v720, %v716
        %v853 = vpack.c.b16 %v725, %v721
        %v854 = vpack.c.b16 %v726, %v722
        %v855 = vpack.c.b16 %v727, %v723
        %v856 = vpack.c.b16 %v728, %v724
        %v857 = vpack.c.b16 %v733, %v729
        %v858 = vpack.c.b16 %v734, %v730
        %v859 = vpack.c.b16 %v735, %v731
        %v860 = vpack.c.b16 %v736, %v732
        %v861 = vpack.c.b16 %v741, %v737
        %v862 = vpack.c.b16 %v742, %v738
        %v863 = vpack.c.b16 %v743, %v739
        %v864 = vpack.c.b16 %v744, %v740
        %v865 = vpack.c.b16 %v749, %v745
        %v866 = vpack.c.b16 %v750, %v746
        %v867 = vpack.c.b16 %v751, %v747
        %v868 = vpack.c.b16 %v752, %v748
        %v869 = vpack.c.b16 %v757, %v753
        %v870 = vpack.c.b16 %v758, %v754
        %v871 = vpack.c.b16 %v759, %v755
        %v872 = vpack.c.b16 %v760, %v756
        %v873 = vpack.c.b16 %v765, %v761
        %v874 = vpack.c.b16 %v766, %v762
        %v875 = vpack.c.b16 %v767, %v763
        %v876 = vpack.c.b16 %v768, %v764
        %v877 = vpack.c.b16 %v773, %v769
        %v878 = vpack.c.b16 %v774, %v770
        %v879 = vpack.c.b16 %v775, %v771
        %v880 = vpack.c.b16 %v776, %v772
        %v881 = vpack.c.b16 %v781, %v777
        %v882 = vpack.c.b16 %v782, %v778
        %v883 = vpack.c.b16 %v783, %v779
        %v884 = vpack.c.b16 %v784, %v780
        %v885 = vpack.c.b16 %v789, %v785
        %v886 = vpack.c.b16 %v790, %v786
        %v887 = vpack.c.b16 %v791, %v787
        %v888 = vpack.c.b16 %v792, %v788
        %985 = vmatprep.subr.bf16.mxu0 %v822
        %986 = vmatpush1.bf16.msra.mxu0 %v821
        %987 = vmatprep.subr.bf16.mxu0 %v818
        %988 = vmatpush1.bf16.msra.mxu0 %v817
        %989 = vmatprep.subr.bf16.mxu0 %v814
        %990 = vmatpush1.bf16.msra.mxu0 %v813
        %991 = vmatprep.subr.bf16.mxu0 %v810
        %992 = vmatpush1.bf16.msra.mxu0 %v809
        %993 = vmatprep.subr.bf16.mxu0 %v806
        %994 = vmatpush1.bf16.msra.mxu0 %v805
        %995 = vmatprep.subr.bf16.mxu0 %v802
        %996 = vmatpush1.bf16.msra.mxu0 %v801
        %997 = vmatprep.subr.bf16.mxu0 %v798
        %998 = vmatpush1.bf16.msra.mxu0 %v797
        %999 = vmatprep.subr.bf16.mxu0 %v794
        %1000 = vmatpush1.bf16.msra.mxu0 %v793
        %1001 = vmatprep.subr.bf16.mxu0 %v854
        %1002 = vmatpush2.bf16.msra.mxu0 %v853
        %1003 = vmatprep.subr.bf16.mxu0 %v850
        %1004 = vmatpush2.bf16.msra.mxu0 %v849
        %1005 = vmatprep.subr.bf16.mxu0 %v846
        %1006 = vmatpush2.bf16.msra.mxu0 %v845
        %1007 = vmatprep.subr.bf16.mxu0 %v842
        %1008 = vmatpush2.bf16.msra.mxu0 %v841
        %1009 = vmatprep.subr.bf16.mxu0 %v838
        %1010 = vmatpush2.bf16.msra.mxu0 %v837
        %1011 = vmatprep.subr.bf16.mxu0 %v834
        %1012 = vmatpush2.bf16.msra.mxu0 %v833
        %1013 = vmatprep.subr.bf16.mxu0 %v830
        %1014 = vmatpush2.bf16.msra.mxu0 %v829
        %1015 = vmatprep.subr.bf16.mxu0 %v826
        %1016 = vmatpush2.bf16.msra.mxu0 %v825
        %1017 = vmatprep.mubr.bf16.mxu0 %v386
        %1018 = vmatmul.mubr.bf16.gmra.mxu0 %v401
        %v1019 = vpop.f32.mrf.mxu0
        %v1020 = vadd.f32 0.0, %v1019
        %v1021 = vpop.f32.mrf.mxu0
        %v1022 = vadd.f32 0.0, %v1021
        %v1023 = vpop.f32.mrf.mxu0
        %v1024 = vpop.f32.mrf.mxu0
        %1025 = vdwg.mxu0
        %1026 = vmatprep.subr.bf16.mxu0 %v886
        %1027 = vmatpush1.bf16.msra.mxu0 %v885
        %1028 = vmatprep.subr.bf16.mxu0 %v882
        %1029 = vmatpush1.bf16.msra.mxu0 %v881
        %1030 = vmatprep.subr.bf16.mxu0 %v878
        %1031 = vmatpush1.bf16.msra.mxu0 %v877
        %1032 = vmatprep.subr.bf16.mxu0 %v874
        %1033 = vmatpush1.bf16.msra.mxu0 %v873
        %1034 = vmatprep.subr.bf16.mxu0 %v870
        %1035 = vmatpush1.bf16.msra.mxu0 %v869
        %1036 = vmatprep.subr.bf16.mxu0 %v866
        %1037 = vmatpush1.bf16.msra.mxu0 %v865
        %1038 = vmatprep.subr.bf16.mxu0 %v862
        %1039 = vmatpush1.bf16.msra.mxu0 %v861
        %1040 = vmatprep.subr.bf16.mxu0 %v858
        %1041 = vmatpush1.bf16.msra.mxu0 %v857
        %1042 = vmatprep.subr.bf16.mxu0 0
        %1043 = vmatpush2.bf16.msra.mxu0 0
        %1044 = vmatprep.subr.bf16.mxu0 0
        %1045 = vmatpush2.bf16.msra.mxu0 0
        %1046 = vmatprep.subr.bf16.mxu0 0
        %1047 = vmatpush2.bf16.msra.mxu0 0
        %1048 = vmatprep.subr.bf16.mxu0 0
        %1049 = vmatpush2.bf16.msra.mxu0 0
        %1050 = vmatprep.subr.bf16.mxu0 0
        %1051 = vmatpush2.bf16.msra.mxu0 0
        %1052 = vmatprep.subr.bf16.mxu0 0
        %1053 = vmatpush2.bf16.msra.mxu0 0
        %1054 = vmatprep.subr.bf16.mxu0 0
        %1055 = vmatpush2.bf16.msra.mxu0 0
        %1056 = vmatprep.subr.bf16.mxu0 0
        %1057 = vmatpush2.bf16.msra.mxu0 0
        %1058 = vmatprep.mubr.bf16.mxu0 0
        %1059 = vmatmul.mubr.bf16.gmra.mxu0 %v408
        %v1060 = vpop.f32.mrf.mxu0
        %v1061 = vadd.f32 %v1020, %v1060
        %v1062 = vpop.f32.mrf.mxu0
        %v1063 = vadd.f32 %v1022, %v1062
        %v1064 = vpop.f32.mrf.mxu0
        %v1065 = vpop.f32.mrf.mxu0
        %1066 = vdwg.mxu0
        %1067 = vmatprep.subr.bf16.mxu0 %v824
        %1068 = vmatpush1.bf16.msra.mxu0 %v823
        %1069 = vmatprep.subr.bf16.mxu0 %v820
        %1070 = vmatpush1.bf16.msra.mxu0 %v819
        %1071 = vmatprep.subr.bf16.mxu0 %v816
        %1072 = vmatpush1.bf16.msra.mxu0 %v815
        %1073 = vmatprep.subr.bf16.mxu0 %v812
        %1074 = vmatpush1.bf16.msra.mxu0 %v811
        %1075 = vmatprep.subr.bf16.mxu0 %v808
        %1076 = vmatpush1.bf16.msra.mxu0 %v807
        %1077 = vmatprep.subr.bf16.mxu0 %v804
        %1078 = vmatpush1.bf16.msra.mxu0 %v803
        %1079 = vmatprep.subr.bf16.mxu0 %v800
        %1080 = vmatpush1.bf16.msra.mxu0 %v799
        %1081 = vmatprep.subr.bf16.mxu0 %v796
        %1082 = vmatpush1.bf16.msra.mxu0 %v795
        %1083 = vmatprep.subr.bf16.mxu0 %v856
        %1084 = vmatpush2.bf16.msra.mxu0 %v855
        %1085 = vmatprep.subr.bf16.mxu0 %v852
        %1086 = vmatpush2.bf16.msra.mxu0 %v851
        %1087 = vmatprep.subr.bf16.mxu0 %v848
        %1088 = vmatpush2.bf16.msra.mxu0 %v847
        %1089 = vmatprep.subr.bf16.mxu0 %v844
        %1090 = vmatpush2.bf16.msra.mxu0 %v843
        %1091 = vmatprep.subr.bf16.mxu0 %v840
        %1092 = vmatpush2.bf16.msra.mxu0 %v839
        %1093 = vmatprep.subr.bf16.mxu0 %v836
        %1094 = vmatpush2.bf16.msra.mxu0 %v835
        %1095 = vmatprep.subr.bf16.mxu0 %v832
        %1096 = vmatpush2.bf16.msra.mxu0 %v831
        %1097 = vmatprep.subr.bf16.mxu0 %v828
        %1098 = vmatpush2.bf16.msra.mxu0 %v827
        %1099 = vmatprep.mubr.bf16.mxu0 %v386
        %1100 = vmatmul.mubr.bf16.gmra.mxu0 %v401
        %v1101 = vpop.f32.mrf.mxu0
        %v1102 = vadd.f32 0.0, %v1101
        %v1103 = vpop.f32.mrf.mxu0
        %v1104 = vadd.f32 0.0, %v1103
        %v1105 = vpop.f32.mrf.mxu0
        %v1106 = vpop.f32.mrf.mxu0
        %1107 = vdwg.mxu0
        %1108 = vmatprep.subr.bf16.mxu0 %v888
        %1109 = vmatpush1.bf16.msra.mxu0 %v887
        %1110 = vmatprep.subr.bf16.mxu0 %v884
        %1111 = vmatpush1.bf16.msra.mxu0 %v883
        %1112 = vmatprep.subr.bf16.mxu0 %v880
        %1113 = vmatpush1.bf16.msra.mxu0 %v879
        %1114 = vmatprep.subr.bf16.mxu0 %v876
        %1115 = vmatpush1.bf16.msra.mxu0 %v875
        %1116 = vmatprep.subr.bf16.mxu0 %v872
        %1117 = vmatpush1.bf16.msra.mxu0 %v871
        %1118 = vmatprep.subr.bf16.mxu0 %v868
        %1119 = vmatpush1.bf16.msra.mxu0 %v867
        %1120 = vmatprep.subr.bf16.mxu0 %v864
        %1121 = vmatpush1.bf16.msra.mxu0 %v863
        %1122 = vmatprep.subr.bf16.mxu0 %v860
        %1123 = vmatpush1.bf16.msra.mxu0 %v859
        %1124 = vmatprep.subr.bf16.mxu0 0
        %1125 = vmatpush2.bf16.msra.mxu0 0
        %1126 = vmatprep.subr.bf16.mxu0 0
        %1127 = vmatpush2.bf16.msra.mxu0 0
        %1128 = vmatprep.subr.bf16.mxu0 0
        %1129 = vmatpush2.bf16.msra.mxu0 0
        %1130 = vmatprep.subr.bf16.mxu0 0
        %1131 = vmatpush2.bf16.msra.mxu0 0
        %1132 = vmatprep.subr.bf16.mxu0 0
        %1133 = vmatpush2.bf16.msra.mxu0 0
        %1134 = vmatprep.subr.bf16.mxu0 0
        %1135 = vmatpush2.bf16.msra.mxu0 0
        %1136 = vmatprep.subr.bf16.mxu0 0
        %1137 = vmatpush2.bf16.msra.mxu0 0
        %1138 = vmatprep.subr.bf16.mxu0 0
        %1139 = vmatpush2.bf16.msra.mxu0 0
        %1140 = vmatprep.mubr.bf16.mxu0 0
        %1141 = vmatmul.mubr.bf16.gmra.mxu0 %v408
        %v1142 = vpop.f32.mrf.mxu0
        %v1143 = vadd.f32 %v1102, %v1142
        %v1144 = vpop.f32.mrf.mxu0
        %v1145 = vadd.f32 %v1104, %v1144
        %v1146 = vpop.f32.mrf.mxu0
        %v1147 = vpop.f32.mrf.mxu0
        %1148 = vdwg.mxu0
        %v1149 = vld [vmem:[%s2] sm:$0x3]
        %v1151 = vlaneseq
        %v1152 = vshrl.u32 %v1151, 7
        %v1153 = vsub.s32 0, %v1152
        %v1154 = vrot.slane %v1149, %v1153
        %v1155 = vlaneseq
        %v1156 = vshrl.u32 %v1155, 7
        %v1157 = vsub.s32 1, %v1156
        %v1158 = vrot.slane %v1149, %v1157
        %v1161 = vadd.f32 %v1061, %v1154
        %v1162 = vadd.f32 %v1063, %v1158
        %v1163 = vmax.f32 %v1161, 0.0
        %v1164 = vmax.f32 %v1162, 0.0
        %v1165 = vld [vmem:[%s9] sm:$0x3]
        %v1167 = vlaneseq
        %v1168 = vshrl.u32 %v1167, 7
        %v1169 = vsub.s32 0, %v1168
        %v1170 = vrot.slane %v1165, %v1169
        %v1171 = vlaneseq
        %v1172 = vshrl.u32 %v1171, 7
        %v1173 = vsub.s32 1, %v1172
        %v1174 = vrot.slane %v1165, %v1173
        %v1177 = vadd.f32 %v1143, %v1170
        %v1178 = vadd.f32 %v1145, %v1174
        %v1179 = vpack.c.bf16 %v1163, %v1163
        %v1180 = vpack.c.bf16 %v1164, %v1164
        %v1182 = vshrl.u32 %v1179, 16
        %v1184 = vrot.slane %v1182, 7
        %v1185 = vshll.u32 %v1179, 16
        %v1187 = vor.u32 %v1184, %v1185
        %v1189 = vshrl.u32 %v1180, 16
        %v1191 = vrot.slane %v1189, 7
        %v1192 = vshll.u32 %v1180, 16
        %v1194 = vor.u32 %v1191, %v1192
        %v1197 = vsel %vm400, 0, %v1187
        %v1198 = vsel %vm400, 0, %v1194
        %v1199 = vrot.slane %v1185, 1
        %v1200 = vor.u32 %v1182, %v1199
        %v1201 = vrot.slane %v1192, 1
        %v1202 = vor.u32 %v1189, %v1201
        %v1205 = vsel %vm407, %v1200, 0
        %v1206 = vsel %vm407, %v1202, 0
        %v1207 = vld [vmem:[#allocation5] sm:$0xff]
        %v1208 = vld [vmem:[#allocation5 + $0x8] sm:$0xff]
        %v1209 = vld [vmem:[#allocation5 + $0x10] sm:$0xff]
        %v1210 = vld [vmem:[#allocation5 + $0x18] sm:$0xff]
        %v1211 = vld [vmem:[#allocation5 + $0x20] sm:$0xff]
        %v1212 = vld [vmem:[#allocation5 + $0x28] sm:$0xff]
        %v1213 = vld [vmem:[#allocation5 + $0x30] sm:$0xff]
        %v1214 = vld [vmem:[#allocation5 + $0x38] sm:$0xff]
        %v1215 = vld [vmem:[#allocation5 + $0x40] sm:$0xff]
        %v1216 = vld [vmem:[#allocation5 + $0x48] sm:$0xff]
        %v1217 = vld [vmem:[#allocation5 + $0x50] sm:$0xff]
        %v1218 = vld [vmem:[#allocation5 + $0x58] sm:$0xff]
        %v1219 = vld [vmem:[#allocation5 + $0x60] sm:$0xff]
        %v1220 = vld [vmem:[#allocation5 + $0x68] sm:$0xff]
        %v1221 = vld [vmem:[#allocation5 + $0x70] sm:$0xff]
        %v1222 = vld [vmem:[#allocation5 + $0x78] sm:$0xff]
        %v1223 = vld [vmem:[#allocation5 + $0x80] sm:$0xff]
        %v1224 = vld [vmem:[#allocation5 + $0x88] sm:$0xff]
        %v1225 = vld [vmem:[#allocation5 + $0x90] sm:$0xff]
        %v1226 = vld [vmem:[#allocation5 + $0x98] sm:$0xff]
        %v1227 = vld [vmem:[#allocation5 + $0xa0] sm:$0xff]
        %v1228 = vld [vmem:[#allocation5 + $0xa8] sm:$0xff]
        %v1229 = vld [vmem:[#allocation5 + $0xb0] sm:$0xff]
        %v1230 = vld [vmem:[#allocation5 + $0xb8] sm:$0xff]
        %v1231 = vld [vmem:[#allocation5 + $0xc0] sm:$0xff]
        %v1232 = vld [vmem:[#allocation5 + $0xc8] sm:$0xff]
        %v1233 = vld [vmem:[#allocation5 + $0xd0] sm:$0xff]
        %v1234 = vld [vmem:[#allocation5 + $0xd8] sm:$0xff]
        %v1235 = vld [vmem:[#allocation5 + $0xe0] sm:$0xff]
        %v1236 = vld [vmem:[#allocation5 + $0xe8] sm:$0xff]
        %v1237 = vld [vmem:[#allocation5 + $0xf0] sm:$0xff]
        %v1238 = vld [vmem:[#allocation5 + $0xf8] sm:$0xff]
        %v1239 = vld [vmem:[#allocation5 + $0x100] sm:$0xff]
        %v1240 = vld [vmem:[#allocation5 + $0x108] sm:$0xff]
        %v1241 = vld [vmem:[#allocation5 + $0x110] sm:$0xff]
        %v1242 = vld [vmem:[#allocation5 + $0x118] sm:$0xff]
        %v1243 = vld [vmem:[#allocation5 + $0x120] sm:$0xff]
        %v1244 = vld [vmem:[#allocation5 + $0x128] sm:$0xff]
        %v1245 = vld [vmem:[#allocation5 + $0x130] sm:$0xff]
        %v1246 = vld [vmem:[#allocation5 + $0x138] sm:$0xff]
        %v1247 = vld [vmem:[#allocation5 + $0x140] sm:$0xff]
        %v1248 = vld [vmem:[#allocation5 + $0x148] sm:$0xff]
        %v1249 = vld [vmem:[#allocation5 + $0x150] sm:$0xff]
        %v1250 = vld [vmem:[#allocation5 + $0x158] sm:$0xff]
        %v1251 = vld [vmem:[#allocation5 + $0x160] sm:$0xff]
        %v1252 = vld [vmem:[#allocation5 + $0x168] sm:$0xff]
        %v1253 = vld [vmem:[#allocation5 + $0x170] sm:$0xff]
        %v1254 = vld [vmem:[#allocation5 + $0x178] sm:$0xff]
        %v1255 = vld [vmem:[#allocation5 + $0x180] sm:$0xff]
        %v1256 = vld [vmem:[#allocation5 + $0x188] sm:$0xff]
        %v1257 = vld [vmem:[#allocation5 + $0x190] sm:$0xff]
        %v1258 = vld [vmem:[#allocation5 + $0x198] sm:$0xff]
        %v1259 = vld [vmem:[#allocation5 + $0x1a0] sm:$0xff]
        %v1260 = vld [vmem:[#allocation5 + $0x1a8] sm:$0xff]
        %v1261 = vld [vmem:[#allocation5 + $0x1b0] sm:$0xff]
        %v1262 = vld [vmem:[#allocation5 + $0x1b8] sm:$0xff]
        %v1263 = vld [vmem:[#allocation5 + $0x1c0] sm:$0xff]
        %v1264 = vld [vmem:[#allocation5 + $0x1c8] sm:$0xff]
        %v1265 = vld [vmem:[#allocation5 + $0x1d0] sm:$0xff]
        %v1266 = vld [vmem:[#allocation5 + $0x1d8] sm:$0xff]
        %v1267 = vld [vmem:[#allocation5 + $0x1e0] sm:$0xff]
        %v1268 = vld [vmem:[#allocation5 + $0x1e8] sm:$0xff]
        %v1269 = vld [vmem:[#allocation5 + $0x1f0] sm:$0xff]
        %v1270 = vld [vmem:[#allocation5 + $0x1f8] sm:$0xff]
        %v1271 = vld [vmem:[#allocation5 + $0x200] sm:$0xff]
        %v1272 = vld [vmem:[#allocation5 + $0x208] sm:$0xff]
        %v1273 = vld [vmem:[#allocation5 + $0x210] sm:$0xff]
        %v1274 = vld [vmem:[#allocation5 + $0x218] sm:$0xff]
        %v1275 = vld [vmem:[#allocation5 + $0x220] sm:$0xff]
        %v1276 = vld [vmem:[#allocation5 + $0x228] sm:$0xff]
        %v1277 = vld [vmem:[#allocation5 + $0x230] sm:$0xff]
        %v1278 = vld [vmem:[#allocation5 + $0x238] sm:$0xff]
        %v1279 = vld [vmem:[#allocation5 + $0x240] sm:$0xff]
        %v1280 = vld [vmem:[#allocation5 + $0x248] sm:$0xff]
        %v1281 = vld [vmem:[#allocation5 + $0x250] sm:$0xff]
        %v1282 = vld [vmem:[#allocation5 + $0x258] sm:$0xff]
        %v1283 = vld [vmem:[#allocation5 + $0x260] sm:$0xff]
        %v1284 = vld [vmem:[#allocation5 + $0x268] sm:$0xff]
        %v1285 = vld [vmem:[#allocation5 + $0x270] sm:$0xff]
        %v1286 = vld [vmem:[#allocation5 + $0x278] sm:$0xff]
        %v1287 = vld [vmem:[#allocation5 + $0x280] sm:$0xff]
        %v1288 = vld [vmem:[#allocation5 + $0x288] sm:$0xff]
        %v1289 = vld [vmem:[#allocation5 + $0x290] sm:$0xff]
        %v1290 = vld [vmem:[#allocation5 + $0x298] sm:$0xff]
        %v1291 = vld [vmem:[#allocation5 + $0x2a0] sm:$0xff]
        %v1292 = vld [vmem:[#allocation5 + $0x2a8] sm:$0xff]
        %v1293 = vld [vmem:[#allocation5 + $0x2b0] sm:$0xff]
        %v1294 = vld [vmem:[#allocation5 + $0x2b8] sm:$0xff]
        %v1295 = vld [vmem:[#allocation5 + $0x2c0] sm:$0xff]
        %v1296 = vld [vmem:[#allocation5 + $0x2c8] sm:$0xff]
        %v1297 = vld [vmem:[#allocation5 + $0x2d0] sm:$0xff]
        %v1298 = vld [vmem:[#allocation5 + $0x2d8] sm:$0xff]
        %v1299 = vld [vmem:[#allocation5 + $0x2e0] sm:$0xff]
        %v1300 = vld [vmem:[#allocation5 + $0x2e8] sm:$0xff]
        %v1301 = vld [vmem:[#allocation5 + $0x2f0] sm:$0xff]
        %v1302 = vld [vmem:[#allocation5 + $0x2f8] sm:$0xff]
        %v1303 = vld [vmem:[%s4] sm:$0x3]
        %v1305 = vlaneseq
        %v1306 = vshrl.u32 %v1305, 7
        %v1307 = vsub.s32 0, %v1306
        %v1308 = vrot.slane %v1303, %v1307
        %v1309 = vlaneseq
        %v1310 = vshrl.u32 %v1309, 7
        %v1311 = vsub.s32 1, %v1310
        %v1312 = vrot.slane %v1303, %v1311
        %v1411 = vunpack.c.l.b16 %v1207
        %v1412 = vunpack.c.h.b16 %v1207
        %v1413 = vunpack.c.l.b16 %v1208
        %v1414 = vunpack.c.h.b16 %v1208
        %v1415 = vunpack.c.l.b16 %v1209
        %v1416 = vunpack.c.h.b16 %v1209
        %v1417 = vunpack.c.l.b16 %v1210
        %v1418 = vunpack.c.h.b16 %v1210
        %v1419 = vunpack.c.l.b16 %v1211
        %v1420 = vunpack.c.h.b16 %v1211
        %v1421 = vunpack.c.l.b16 %v1212
        %v1422 = vunpack.c.h.b16 %v1212
        %v1423 = vunpack.c.l.b16 %v1213
        %v1424 = vunpack.c.h.b16 %v1213
        %v1425 = vunpack.c.l.b16 %v1214
        %v1426 = vunpack.c.h.b16 %v1214
        %v1427 = vunpack.c.l.b16 %v1215
        %v1428 = vunpack.c.h.b16 %v1215
        %v1429 = vunpack.c.l.b16 %v1216
        %v1430 = vunpack.c.h.b16 %v1216
        %v1431 = vunpack.c.l.b16 %v1217
        %v1432 = vunpack.c.h.b16 %v1217
        %v1433 = vunpack.c.l.b16 %v1218
        %v1434 = vunpack.c.h.b16 %v1218
        %v1435 = vunpack.c.l.b16 %v1219
        %v1436 = vunpack.c.h.b16 %v1219
        %v1437 = vunpack.c.l.b16 %v1220
        %v1438 = vunpack.c.h.b16 %v1220
        %v1439 = vunpack.c.l.b16 %v1221
        %v1440 = vunpack.c.h.b16 %v1221
        %v1441 = vunpack.c.l.b16 %v1222
        %v1442 = vunpack.c.h.b16 %v1222
        %v1443 = vunpack.c.l.b16 %v1223
        %v1444 = vunpack.c.h.b16 %v1223
        %v1445 = vunpack.c.l.b16 %v1224
        %v1446 = vunpack.c.h.b16 %v1224
        %v1447 = vunpack.c.l.b16 %v1225
        %v1448 = vunpack.c.h.b16 %v1225
        %v1449 = vunpack.c.l.b16 %v1226
        %v1450 = vunpack.c.h.b16 %v1226
        %v1451 = vunpack.c.l.b16 %v1227
        %v1452 = vunpack.c.h.b16 %v1227
        %v1453 = vunpack.c.l.b16 %v1228
        %v1454 = vunpack.c.h.b16 %v1228
        %v1455 = vunpack.c.l.b16 %v1229
        %v1456 = vunpack.c.h.b16 %v1229
        %v1457 = vunpack.c.l.b16 %v1230
        %v1458 = vunpack.c.h.b16 %v1230
        %v1459 = vunpack.c.l.b16 %v1231
        %v1460 = vunpack.c.h.b16 %v1231
        %v1461 = vunpack.c.l.b16 %v1232
        %v1462 = vunpack.c.h.b16 %v1232
        %v1463 = vunpack.c.l.b16 %v1233
        %v1464 = vunpack.c.h.b16 %v1233
        %v1465 = vunpack.c.l.b16 %v1234
        %v1466 = vunpack.c.h.b16 %v1234
        %v1467 = vunpack.c.l.b16 %v1235
        %v1468 = vunpack.c.h.b16 %v1235
        %v1469 = vunpack.c.l.b16 %v1236
        %v1470 = vunpack.c.h.b16 %v1236
        %v1471 = vunpack.c.l.b16 %v1237
        %v1472 = vunpack.c.h.b16 %v1237
        %v1473 = vunpack.c.l.b16 %v1238
        %v1474 = vunpack.c.h.b16 %v1238
        %v1475 = vunpack.c.l.b16 %v1239
        %v1476 = vunpack.c.h.b16 %v1239
        %v1477 = vunpack.c.l.b16 %v1240
        %v1478 = vunpack.c.h.b16 %v1240
        %v1479 = vunpack.c.l.b16 %v1241
        %v1480 = vunpack.c.h.b16 %v1241
        %v1481 = vunpack.c.l.b16 %v1242
        %v1482 = vunpack.c.h.b16 %v1242
        %v1483 = vunpack.c.l.b16 %v1243
        %v1484 = vunpack.c.h.b16 %v1243
        %v1485 = vunpack.c.l.b16 %v1244
        %v1486 = vunpack.c.h.b16 %v1244
        %v1487 = vunpack.c.l.b16 %v1245
        %v1488 = vunpack.c.h.b16 %v1245
        %v1489 = vunpack.c.l.b16 %v1246
        %v1490 = vunpack.c.h.b16 %v1246
        %v1491 = vunpack.c.l.b16 %v1247
        %v1492 = vunpack.c.h.b16 %v1247
        %v1493 = vunpack.c.l.b16 %v1248
        %v1494 = vunpack.c.h.b16 %v1248
        %v1495 = vunpack.c.l.b16 %v1249
        %v1496 = vunpack.c.h.b16 %v1249
        %v1497 = vunpack.c.l.b16 %v1250
        %v1498 = vunpack.c.h.b16 %v1250
        %v1499 = vunpack.c.l.b16 %v1251
        %v1500 = vunpack.c.h.b16 %v1251
        %v1501 = vunpack.c.l.b16 %v1252
        %v1502 = vunpack.c.h.b16 %v1252
        %v1503 = vunpack.c.l.b16 %v1253
        %v1504 = vunpack.c.h.b16 %v1253
        %v1505 = vunpack.c.l.b16 %v1254
        %v1506 = vunpack.c.h.b16 %v1254
        %v1507 = vunpack.c.l.b16 %v1255
        %v1508 = vunpack.c.h.b16 %v1255
        %v1509 = vunpack.c.l.b16 %v1256
        %v1510 = vunpack.c.h.b16 %v1256
        %v1511 = vunpack.c.l.b16 %v1257
        %v1512 = vunpack.c.h.b16 %v1257
        %v1513 = vunpack.c.l.b16 %v1258
        %v1514 = vunpack.c.h.b16 %v1258
        %v1515 = vunpack.c.l.b16 %v1259
        %v1516 = vunpack.c.h.b16 %v1259
        %v1517 = vunpack.c.l.b16 %v1260
        %v1518 = vunpack.c.h.b16 %v1260
        %v1519 = vunpack.c.l.b16 %v1261
        %v1520 = vunpack.c.h.b16 %v1261
        %v1521 = vunpack.c.l.b16 %v1262
        %v1522 = vunpack.c.h.b16 %v1262
        %v1523 = vunpack.c.l.b16 %v1263
        %v1524 = vunpack.c.h.b16 %v1263
        %v1525 = vunpack.c.l.b16 %v1264
        %v1526 = vunpack.c.h.b16 %v1264
        %v1527 = vunpack.c.l.b16 %v1265
        %v1528 = vunpack.c.h.b16 %v1265
        %v1529 = vunpack.c.l.b16 %v1266
        %v1530 = vunpack.c.h.b16 %v1266
        %v1531 = vunpack.c.l.b16 %v1267
        %v1532 = vunpack.c.h.b16 %v1267
        %v1533 = vunpack.c.l.b16 %v1268
        %v1534 = vunpack.c.h.b16 %v1268
        %v1535 = vunpack.c.l.b16 %v1269
        %v1536 = vunpack.c.h.b16 %v1269
        %v1537 = vunpack.c.l.b16 %v1270
        %v1538 = vunpack.c.h.b16 %v1270
        %v1539 = vunpack.c.l.b16 %v1271
        %v1540 = vunpack.c.h.b16 %v1271
        %v1541 = vunpack.c.l.b16 %v1272
        %v1542 = vunpack.c.h.b16 %v1272
        %v1543 = vunpack.c.l.b16 %v1273
        %v1544 = vunpack.c.h.b16 %v1273
        %v1545 = vunpack.c.l.b16 %v1274
        %v1546 = vunpack.c.h.b16 %v1274
        %v1547 = vunpack.c.l.b16 %v1275
        %v1548 = vunpack.c.h.b16 %v1275
        %v1549 = vunpack.c.l.b16 %v1276
        %v1550 = vunpack.c.h.b16 %v1276
        %v1551 = vunpack.c.l.b16 %v1277
        %v1552 = vunpack.c.h.b16 %v1277
        %v1553 = vunpack.c.l.b16 %v1278
        %v1554 = vunpack.c.h.b16 %v1278
        %v1555 = vunpack.c.l.b16 %v1279
        %v1556 = vunpack.c.h.b16 %v1279
        %v1557 = vunpack.c.l.b16 %v1280
        %v1558 = vunpack.c.h.b16 %v1280
        %v1559 = vunpack.c.l.b16 %v1281
        %v1560 = vunpack.c.h.b16 %v1281
        %v1561 = vunpack.c.l.b16 %v1282
        %v1562 = vunpack.c.h.b16 %v1282
        %v1563 = vunpack.c.l.b16 %v1283
        %v1564 = vunpack.c.h.b16 %v1283
        %v1565 = vunpack.c.l.b16 %v1284
        %v1566 = vunpack.c.h.b16 %v1284
        %v1567 = vunpack.c.l.b16 %v1285
        %v1568 = vunpack.c.h.b16 %v1285
        %v1569 = vunpack.c.l.b16 %v1286
        %v1570 = vunpack.c.h.b16 %v1286
        %v1571 = vunpack.c.l.b16 %v1287
        %v1572 = vunpack.c.h.b16 %v1287
        %v1573 = vunpack.c.l.b16 %v1288
        %v1574 = vunpack.c.h.b16 %v1288
        %v1575 = vunpack.c.l.b16 %v1289
        %v1576 = vunpack.c.h.b16 %v1289
        %v1577 = vunpack.c.l.b16 %v1290
        %v1578 = vunpack.c.h.b16 %v1290
        %v1579 = vunpack.c.l.b16 %v1291
        %v1580 = vunpack.c.h.b16 %v1291
        %v1581 = vunpack.c.l.b16 %v1292
        %v1582 = vunpack.c.h.b16 %v1292
        %v1583 = vunpack.c.l.b16 %v1293
        %v1584 = vunpack.c.h.b16 %v1293
        %v1585 = vunpack.c.l.b16 %v1294
        %v1586 = vunpack.c.h.b16 %v1294
        %v1587 = vunpack.c.l.b16 %v1295
        %v1588 = vunpack.c.h.b16 %v1295
        %v1589 = vunpack.c.l.b16 %v1296
        %v1590 = vunpack.c.h.b16 %v1296
        %v1591 = vunpack.c.l.b16 %v1297
        %v1592 = vunpack.c.h.b16 %v1297
        %v1593 = vunpack.c.l.b16 %v1298
        %v1594 = vunpack.c.h.b16 %v1298
        %v1595 = vunpack.c.l.b16 %v1299
        %v1596 = vunpack.c.h.b16 %v1299
        %v1597 = vunpack.c.l.b16 %v1300
        %v1598 = vunpack.c.h.b16 %v1300
        %v1599 = vunpack.c.l.b16 %v1301
        %v1600 = vunpack.c.h.b16 %v1301
        %v1601 = vunpack.c.l.b16 %v1302
        %v1602 = vunpack.c.h.b16 %v1302
        %v1603 = vpack.c.b16 %v1413, %v1411
        %v1604 = vpack.c.b16 %v1414, %v1412
        %v1605 = vpack.c.b16 %v1417, %v1415
        %v1606 = vpack.c.b16 %v1418, %v1416
        %v1607 = vpack.c.b16 %v1421, %v1419
        %v1608 = vpack.c.b16 %v1422, %v1420
        %v1609 = vpack.c.b16 %v1425, %v1423
        %v1610 = vpack.c.b16 %v1426, %v1424
        %v1611 = vpack.c.b16 %v1429, %v1427
        %v1612 = vpack.c.b16 %v1430, %v1428
        %v1613 = vpack.c.b16 %v1433, %v1431
        %v1614 = vpack.c.b16 %v1434, %v1432
        %v1615 = vpack.c.b16 %v1437, %v1435
        %v1616 = vpack.c.b16 %v1438, %v1436
        %v1617 = vpack.c.b16 %v1441, %v1439
        %v1618 = vpack.c.b16 %v1442, %v1440
        %v1619 = vpack.c.b16 %v1445, %v1443
        %v1620 = vpack.c.b16 %v1446, %v1444
        %v1621 = vpack.c.b16 %v1449, %v1447
        %v1622 = vpack.c.b16 %v1450, %v1448
        %v1623 = vpack.c.b16 %v1453, %v1451
        %v1624 = vpack.c.b16 %v1454, %v1452
        %v1625 = vpack.c.b16 %v1457, %v1455
        %v1626 = vpack.c.b16 %v1458, %v1456
        %v1627 = vpack.c.b16 %v1461, %v1459
        %v1628 = vpack.c.b16 %v1462, %v1460
        %v1629 = vpack.c.b16 %v1465, %v1463
        %v1630 = vpack.c.b16 %v1466, %v1464
        %v1631 = vpack.c.b16 %v1469, %v1467
        %v1632 = vpack.c.b16 %v1470, %v1468
        %v1633 = vpack.c.b16 %v1473, %v1471
        %v1634 = vpack.c.b16 %v1474, %v1472
        %v1635 = vpack.c.b16 %v1477, %v1475
        %v1636 = vpack.c.b16 %v1478, %v1476
        %v1637 = vpack.c.b16 %v1481, %v1479
        %v1638 = vpack.c.b16 %v1482, %v1480
        %v1639 = vpack.c.b16 %v1485, %v1483
        %v1640 = vpack.c.b16 %v1486, %v1484
        %v1641 = vpack.c.b16 %v1489, %v1487
        %v1642 = vpack.c.b16 %v1490, %v1488
        %v1643 = vpack.c.b16 %v1493, %v1491
        %v1644 = vpack.c.b16 %v1494, %v1492
        %v1645 = vpack.c.b16 %v1497, %v1495
        %v1646 = vpack.c.b16 %v1498, %v1496
        %v1647 = vpack.c.b16 %v1501, %v1499
        %v1648 = vpack.c.b16 %v1502, %v1500
        %v1649 = vpack.c.b16 %v1505, %v1503
        %v1650 = vpack.c.b16 %v1506, %v1504
        %v1651 = vpack.c.b16 %v1509, %v1507
        %v1652 = vpack.c.b16 %v1510, %v1508
        %v1653 = vpack.c.b16 %v1513, %v1511
        %v1654 = vpack.c.b16 %v1514, %v1512
        %v1655 = vpack.c.b16 %v1517, %v1515
        %v1656 = vpack.c.b16 %v1518, %v1516
        %v1657 = vpack.c.b16 %v1521, %v1519
        %v1658 = vpack.c.b16 %v1522, %v1520
        %v1659 = vpack.c.b16 %v1525, %v1523
        %v1660 = vpack.c.b16 %v1526, %v1524
        %v1661 = vpack.c.b16 %v1529, %v1527
        %v1662 = vpack.c.b16 %v1530, %v1528
        %v1663 = vpack.c.b16 %v1533, %v1531
        %v1664 = vpack.c.b16 %v1534, %v1532
        %v1665 = vpack.c.b16 %v1537, %v1535
        %v1666 = vpack.c.b16 %v1538, %v1536
        %v1667 = vpack.c.b16 %v1541, %v1539
        %v1668 = vpack.c.b16 %v1542, %v1540
        %v1669 = vpack.c.b16 %v1545, %v1543
        %v1670 = vpack.c.b16 %v1546, %v1544
        %v1671 = vpack.c.b16 %v1549, %v1547
        %v1672 = vpack.c.b16 %v1550, %v1548
        %v1673 = vpack.c.b16 %v1553, %v1551
        %v1674 = vpack.c.b16 %v1554, %v1552
        %v1675 = vpack.c.b16 %v1557, %v1555
        %v1676 = vpack.c.b16 %v1558, %v1556
        %v1677 = vpack.c.b16 %v1561, %v1559
        %v1678 = vpack.c.b16 %v1562, %v1560
        %v1679 = vpack.c.b16 %v1565, %v1563
        %v1680 = vpack.c.b16 %v1566, %v1564
        %v1681 = vpack.c.b16 %v1569, %v1567
        %v1682 = vpack.c.b16 %v1570, %v1568
        %v1683 = vpack.c.b16 %v1573, %v1571
        %v1684 = vpack.c.b16 %v1574, %v1572
        %v1685 = vpack.c.b16 %v1577, %v1575
        %v1686 = vpack.c.b16 %v1578, %v1576
        %v1687 = vpack.c.b16 %v1581, %v1579
        %v1688 = vpack.c.b16 %v1582, %v1580
        %v1689 = vpack.c.b16 %v1585, %v1583
        %v1690 = vpack.c.b16 %v1586, %v1584
        %v1691 = vpack.c.b16 %v1589, %v1587
        %v1692 = vpack.c.b16 %v1590, %v1588
        %v1693 = vpack.c.b16 %v1593, %v1591
        %v1694 = vpack.c.b16 %v1594, %v1592
        %v1695 = vpack.c.b16 %v1597, %v1595
        %v1696 = vpack.c.b16 %v1598, %v1596
        %v1697 = vpack.c.b16 %v1601, %v1599
        %v1698 = vpack.c.b16 %v1602, %v1600
        %1795 = vmatprep.subr.bf16.mxu0 %v1618
        %1796 = vmatpush1.bf16.msra.mxu0 %v1617
        %1797 = vmatprep.subr.bf16.mxu0 %v1616
        %1798 = vmatpush1.bf16.msra.mxu0 %v1615
        %1799 = vmatprep.subr.bf16.mxu0 %v1614
        %1800 = vmatpush1.bf16.msra.mxu0 %v1613
        %1801 = vmatprep.subr.bf16.mxu0 %v1612
        %1802 = vmatpush1.bf16.msra.mxu0 %v1611
        %1803 = vmatprep.subr.bf16.mxu0 %v1610
        %1804 = vmatpush1.bf16.msra.mxu0 %v1609
        %1805 = vmatprep.subr.bf16.mxu0 %v1608
        %1806 = vmatpush1.bf16.msra.mxu0 %v1607
        %1807 = vmatprep.subr.bf16.mxu0 %v1606
        %1808 = vmatpush1.bf16.msra.mxu0 %v1605
        %1809 = vmatprep.subr.bf16.mxu0 %v1604
        %1810 = vmatpush1.bf16.msra.mxu0 %v1603
        %1811 = vmatprep.subr.bf16.mxu0 %v1634
        %1812 = vmatpush2.bf16.msra.mxu0 %v1633
        %1813 = vmatprep.subr.bf16.mxu0 %v1632
        %1814 = vmatpush2.bf16.msra.mxu0 %v1631
        %1815 = vmatprep.subr.bf16.mxu0 %v1630
        %1816 = vmatpush2.bf16.msra.mxu0 %v1629
        %1817 = vmatprep.subr.bf16.mxu0 %v1628
        %1818 = vmatpush2.bf16.msra.mxu0 %v1627
        %1819 = vmatprep.subr.bf16.mxu0 %v1626
        %1820 = vmatpush2.bf16.msra.mxu0 %v1625
        %1821 = vmatprep.subr.bf16.mxu0 %v1624
        %1822 = vmatpush2.bf16.msra.mxu0 %v1623
        %1823 = vmatprep.subr.bf16.mxu0 %v1622
        %1824 = vmatpush2.bf16.msra.mxu0 %v1621
        %1825 = vmatprep.subr.bf16.mxu0 %v1620
        %1826 = vmatpush2.bf16.msra.mxu0 %v1619
        %1827 = vmatprep.mubr.bf16.mxu0 %v1198
        %1828 = vmatmul.mubr.bf16.gmra.mxu0 %v1197
        %v1829 = vpop.f32.mrf.mxu0
        %v1830 = vadd.f32 %v1308, %v1829
        %v1831 = vpop.f32.mrf.mxu0
        %v1832 = vadd.f32 %v1312, %v1831
        %v1833 = vpop.f32.mrf.mxu0
        %v1834 = vpop.f32.mrf.mxu0
        %1835 = vdwg.mxu0
        %1836 = vmatprep.subr.bf16.mxu0 %v1650
        %1837 = vmatpush1.bf16.msra.mxu0 %v1649
        %1838 = vmatprep.subr.bf16.mxu0 %v1648
        %1839 = vmatpush1.bf16.msra.mxu0 %v1647
        %1840 = vmatprep.subr.bf16.mxu0 %v1646
        %1841 = vmatpush1.bf16.msra.mxu0 %v1645
        %1842 = vmatprep.subr.bf16.mxu0 %v1644
        %1843 = vmatpush1.bf16.msra.mxu0 %v1643
        %1844 = vmatprep.subr.bf16.mxu0 %v1642
        %1845 = vmatpush1.bf16.msra.mxu0 %v1641
        %1846 = vmatprep.subr.bf16.mxu0 %v1640
        %1847 = vmatpush1.bf16.msra.mxu0 %v1639
        %1848 = vmatprep.subr.bf16.mxu0 %v1638
        %1849 = vmatpush1.bf16.msra.mxu0 %v1637
        %1850 = vmatprep.subr.bf16.mxu0 %v1636
        %1851 = vmatpush1.bf16.msra.mxu0 %v1635
        %1852 = vmatprep.subr.bf16.mxu0 %v1666
        %1853 = vmatpush2.bf16.msra.mxu0 %v1665
        %1854 = vmatprep.subr.bf16.mxu0 %v1664
        %1855 = vmatpush2.bf16.msra.mxu0 %v1663
        %1856 = vmatprep.subr.bf16.mxu0 %v1662
        %1857 = vmatpush2.bf16.msra.mxu0 %v1661
        %1858 = vmatprep.subr.bf16.mxu0 %v1660
        %1859 = vmatpush2.bf16.msra.mxu0 %v1659
        %1860 = vmatprep.subr.bf16.mxu0 %v1658
        %1861 = vmatpush2.bf16.msra.mxu0 %v1657
        %1862 = vmatprep.subr.bf16.mxu0 %v1656
        %1863 = vmatpush2.bf16.msra.mxu0 %v1655
        %1864 = vmatprep.subr.bf16.mxu0 %v1654
        %1865 = vmatpush2.bf16.msra.mxu0 %v1653
        %1866 = vmatprep.subr.bf16.mxu0 %v1652
        %1867 = vmatpush2.bf16.msra.mxu0 %v1651
        %1868 = vmatprep.mubr.bf16.mxu0 %v1180
        %1869 = vmatmul.mubr.bf16.gmra.mxu0 %v1179
        %v1870 = vpop.f32.mrf.mxu0
        %v1871 = vadd.f32 %v1830, %v1870
        %v1872 = vpop.f32.mrf.mxu0
        %v1873 = vadd.f32 %v1832, %v1872
        %v1874 = vpop.f32.mrf.mxu0
        %v1875 = vpop.f32.mrf.mxu0
        %1876 = vdwg.mxu0
        %1877 = vmatprep.subr.bf16.mxu0 %v1682
        %1878 = vmatpush1.bf16.msra.mxu0 %v1681
        %1879 = vmatprep.subr.bf16.mxu0 %v1680
        %1880 = vmatpush1.bf16.msra.mxu0 %v1679
        %1881 = vmatprep.subr.bf16.mxu0 %v1678
        %1882 = vmatpush1.bf16.msra.mxu0 %v1677
        %1883 = vmatprep.subr.bf16.mxu0 %v1676
        %1884 = vmatpush1.bf16.msra.mxu0 %v1675
        %1885 = vmatprep.subr.bf16.mxu0 %v1674
        %1886 = vmatpush1.bf16.msra.mxu0 %v1673
        %1887 = vmatprep.subr.bf16.mxu0 %v1672
        %1888 = vmatpush1.bf16.msra.mxu0 %v1671
        %1889 = vmatprep.subr.bf16.mxu0 %v1670
        %1890 = vmatpush1.bf16.msra.mxu0 %v1669
        %1891 = vmatprep.subr.bf16.mxu0 %v1668
        %1892 = vmatpush1.bf16.msra.mxu0 %v1667
        %1893 = vmatprep.subr.bf16.mxu0 %v1698
        %1894 = vmatpush2.bf16.msra.mxu0 %v1697
        %1895 = vmatprep.subr.bf16.mxu0 %v1696
        %1896 = vmatpush2.bf16.msra.mxu0 %v1695
        %1897 = vmatprep.subr.bf16.mxu0 %v1694
        %1898 = vmatpush2.bf16.msra.mxu0 %v1693
        %1899 = vmatprep.subr.bf16.mxu0 %v1692
        %1900 = vmatpush2.bf16.msra.mxu0 %v1691
        %1901 = vmatprep.subr.bf16.mxu0 %v1690
        %1902 = vmatpush2.bf16.msra.mxu0 %v1689
        %1903 = vmatprep.subr.bf16.mxu0 %v1688
        %1904 = vmatpush2.bf16.msra.mxu0 %v1687
        %1905 = vmatprep.subr.bf16.mxu0 %v1686
        %1906 = vmatpush2.bf16.msra.mxu0 %v1685
        %1907 = vmatprep.subr.bf16.mxu0 %v1684
        %1908 = vmatpush2.bf16.msra.mxu0 %v1683
        %1909 = vmatprep.mubr.bf16.mxu0 %v1206
        %1910 = vmatmul.mubr.bf16.gmra.mxu0 %v1205
        %v1911 = vpop.f32.mrf.mxu0
        %v1912 = vadd.f32 %v1871, %v1911
        %v1913 = vpop.f32.mrf.mxu0
        %v1914 = vadd.f32 %v1873, %v1913
        %v1915 = vpop.f32.mrf.mxu0
        %v1916 = vpop.f32.mrf.mxu0
        %1917 = vdwg.mxu0
        %v1918 = vrot.slane %v1912, 4
        %v1919 = vadd.f32 %v1912, %v1918
        %v1920 = vrot.slane %v1919, 2
        %v1921 = vadd.f32 %v1919, %v1920
        %v1922 = vrot.slane %v1921, 1
        %v1923 = vadd.f32 %v1921, %v1922
        %v1924 = vrot.slane %v1914, 4
        %v1925 = vadd.f32 %v1914, %v1924
        %v1926 = vrot.slane %v1925, 2
        %v1927 = vadd.f32 %v1925, %v1926
        %v1928 = vrot.slane %v1927, 1
        %v1929 = vadd.f32 %v1927, %v1928
        %1931 = vrot.lane.b32.xlu0 %v1923, 96
        %v1932 = vpop.permute.xlu0 %1931
        %1934 = vrot.lane.b32.xlu0 %v1923, 64
        %v1935 = vpop.permute.xlu0 %1934
        %1937 = vrot.lane.b32.xlu0 %v1923, 32
        %v1938 = vpop.permute.xlu0 %1937
        %1941 = vrot.lane.b32.xlu0 %v1929, 96
        %v1942 = vpop.permute.xlu0 %1941
        %1944 = vrot.lane.b32.xlu0 %v1929, 64
        %v1945 = vpop.permute.xlu0 %1944
        %1947 = vrot.lane.b32.xlu0 %v1929, 32
        %v1948 = vpop.permute.xlu0 %1947
        %v1950 = vcombine.low %v1923, %v1935
        %v1952 = vunpack.c.l.s4 1983009808
        %v1953 = vunpack.c.0.s8 %v1952
        %v1954 = vlaneseq
        %v1955 = vshrl.u32 %v1954, 7
        %v1956 = vsub.s32 %v1953, %v1955
        %v1957 = vrot.slane %v1950, %v1956
        %v1958 = vcombine.low %v1932, %v1938
        %v1960 = vunpack.c.l.s4 1983009808
        %v1961 = vunpack.c.0.s8 %v1960
        %v1962 = vlaneseq
        %v1963 = vshrl.u32 %v1962, 7
        %v1964 = vsub.s32 %v1961, %v1963
        %v1965 = vrot.slane %v1958, %v1964
        %v1966 = vcombine.low %v1929, %v1945
        %v1968 = vunpack.c.l.s4 1983009808
        %v1969 = vunpack.c.0.s8 %v1968
        %v1970 = vlaneseq
        %v1971 = vshrl.u32 %v1970, 7
        %v1972 = vsub.s32 %v1969, %v1971
        %v1973 = vrot.slane %v1966, %v1972
        %v1974 = vcombine.low %v1942, %v1948
        %v1976 = vunpack.c.l.s4 1983009808
        %v1977 = vunpack.c.0.s8 %v1976
        %v1978 = vlaneseq
        %v1979 = vshrl.u32 %v1978, 7
        %v1980 = vsub.s32 %v1977, %v1979
        %v1981 = vrot.slane %v1974, %v1980
        %v1982 = vcombine.low %v1957, %v1965
        %v1984 = vunpack.c.l.s4 1934713408
        %v1985 = vunpack.c.0.s8 %v1984
        %v1986 = vlaneseq
        %v1987 = vshrl.u32 %v1986, 7
        %v1988 = vsub.s32 %v1985, %v1987
        %v1989 = vrot.slane %v1982, %v1988
        %v1990 = vcombine.low %v1973, %v1981
        %v1992 = vunpack.c.l.s4 1934713408
        %v1993 = vunpack.c.0.s8 %v1992
        %v1994 = vlaneseq
        %v1995 = vshrl.u32 %v1994, 7
        %v1996 = vsub.s32 %v1993, %v1995
        %v1997 = vrot.slane %v1990, %v1996
        %v1998 = vcombine.low %v1989, %v1997
        %vm1999 = vcmask 261120
        %v2000 = vsel %vm1999, %v1998, 0.0
        %v2001 = vrot.slane %v2000, 4
        %v2002 = vadd.f32 %v2000, %v2001
        %v2003 = vrot.slane %v2002, 2
        %v2004 = vadd.f32 %v2002, %v2003
        %v2005 = vrot.slane %v2004, 1
        %v2006 = vadd.f32 %v2004, %v2005
        %v2007 = vmul.f32 %v2006, 0.015625
        %v2008 = vld [vmem:[%s5] sm:$0xff]
        %v2009 = vld [vmem:[%s5 + $0x8] sm:$0xff]
        %v2010 = vld [vmem:[%s5 + $0x10] sm:$0xff]
        %v2011 = vld [vmem:[%s5 + $0x18] sm:$0xff]
        %v2012 = vld [vmem:[%s6] sm:$0x1]
        %v2014 = vsel %vm1999, %v2007, 0
        %2016 = vmatprep.subr.mxu0 0.0
        %2017 = vmatpush1.msra.mxu0 0.0
        %2018 = vmatprep.subr.mxu0 0.0
        %2019 = vmatpush1.msra.mxu0 0.0
        %2020 = vmatprep.subr.mxu0 0.0
        %2021 = vmatpush1.msra.mxu0 0.0
        %2022 = vmatprep.subr.mxu0 0.0
        %2023 = vmatpush1.msra.mxu0 0.0
        %2024 = vmatprep.subr.mxu0 0.0
        %2025 = vmatpush1.msra.mxu0 0.0
        %2026 = vmatprep.subr.mxu0 0.0
        %2027 = vmatpush1.msra.mxu0 0.0
        %2028 = vmatprep.subr.mxu0 0.0
        %2029 = vmatpush1.msra.mxu0 0.0
        %2030 = vmatprep.subr.mxu0 0.0
        %2031 = vmatpush1.msra.mxu0 0.0
        %2032 = vmatprep.subr.mxu0 0.0
        %2033 = vmatpush1.msra.mxu0 0.0
        %2034 = vmatprep.subr.mxu0 0.0
        %2035 = vmatpush1.msra.mxu0 0.0
        %2036 = vmatprep.subr.mxu0 0.0
        %2037 = vmatpush1.msra.mxu0 0.0
        %2038 = vmatprep.subr.mxu0 0.0
        %2039 = vmatpush1.msra.mxu0 0.0
        %2040 = vmatprep.subr.mxu0 0.0
        %2041 = vmatpush1.msra.mxu0 %v2011
        %2042 = vmatprep.subr.mxu0 0.0
        %2043 = vmatpush1.msra.mxu0 %v2010
        %2044 = vmatprep.subr.mxu0 0.0
        %2045 = vmatpush1.msra.mxu0 %v2009
        %2046 = vmatprep.subr.mxu0 0.0
        %2047 = vmatpush1.msra.mxu0 %v2008
        %2048 = vmatprep.subr.mxu0 0.0
        %2049 = vmatpush2.msra.mxu0 0.0
        %2050 = vmatprep.subr.mxu0 0.0
        %2051 = vmatpush2.msra.mxu0 0.0
        %2052 = vmatprep.subr.mxu0 0.0
        %2053 = vmatpush2.msra.mxu0 0.0
        %2054 = vmatprep.subr.mxu0 0.0
        %2055 = vmatpush2.msra.mxu0 0.0
        %2056 = vmatprep.subr.mxu0 0.0
        %2057 = vmatpush2.msra.mxu0 0.0
        %2058 = vmatprep.subr.mxu0 0.0
        %2059 = vmatpush2.msra.mxu0 0.0
        %2060 = vmatprep.subr.mxu0 0.0
        %2061 = vmatpush2.msra.mxu0 0.0
        %2062 = vmatprep.subr.mxu0 0.0
        %2063 = vmatpush2.msra.mxu0 0.0
        %2064 = vmatprep.subr.mxu0 0.0
        %2065 = vmatpush2.msra.mxu0 0.0
        %2066 = vmatprep.subr.mxu0 0.0
        %2067 = vmatpush2.msra.mxu0 0.0
        %2068 = vmatprep.subr.mxu0 0.0
        %2069 = vmatpush2.msra.mxu0 0.0
        %2070 = vmatprep.subr.mxu0 0.0
        %2071 = vmatpush2.msra.mxu0 0.0
        %2072 = vmatprep.subr.mxu0 0.0
        %2073 = vmatpush2.msra.mxu0 0.0
        %2074 = vmatprep.subr.mxu0 0.0
        %2075 = vmatpush2.msra.mxu0 0.0
        %2076 = vmatprep.subr.mxu0 0.0
        %2077 = vmatpush2.msra.mxu0 0.0
        %2078 = vmatprep.subr.mxu0 0.0
        %2079 = vmatpush2.msra.mxu0 0.0
        %2080 = vmatprep.mubr.f32.mxu0 0.0
        %2081 = vmatmul.mubr.f32.gmra.mxu0 %v2014
        %v2082 = vpop.f32.mrf.mxu0
        %v2083 = vadd.f32 %v2012, %v2082
        %v2084 = vpop.f32.mrf.mxu0
        %2085 = vdwg.mxu0
        %v2086 = vmax.f32 %v2083, 0.0
        %v2087 = vld [vmem:[%s7] sm:$0x3]
        %v2088 = vld [vmem:[%s8] sm:$0x1]
        %vm2089 = vcmask 15360
        %v2091 = vsel %vm2089, %v2086, 0
        %vm2093 = vcmask 1041408
        %v2095 = vsel %vm2093, %v2087, 0
        %2097 = vmatprep.subr.mxu0 0.0
        %2098 = vmatpush1.msra.mxu0 0.0
        %2099 = vmatprep.subr.mxu0 0.0
        %2100 = vmatpush1.msra.mxu0 0.0
        %2101 = vmatprep.subr.mxu0 0.0
        %2102 = vmatpush1.msra.mxu0 0.0
        %2103 = vmatprep.subr.mxu0 0.0
        %2104 = vmatpush1.msra.mxu0 0.0
        %2105 = vmatprep.subr.mxu0 0.0
        %2106 = vmatpush1.msra.mxu0 0.0
        %2107 = vmatprep.subr.mxu0 0.0
        %2108 = vmatpush1.msra.mxu0 0.0
        %2109 = vmatprep.subr.mxu0 0.0
        %2110 = vmatpush1.msra.mxu0 0.0
        %2111 = vmatprep.subr.mxu0 0.0
        %2112 = vmatpush1.msra.mxu0 0.0
        %2113 = vmatprep.subr.mxu0 0.0
        %2114 = vmatpush1.msra.mxu0 0.0
        %2115 = vmatprep.subr.mxu0 0.0
        %2116 = vmatpush1.msra.mxu0 0.0
        %2117 = vmatprep.subr.mxu0 0.0
        %2118 = vmatpush1.msra.mxu0 0.0
        %2119 = vmatprep.subr.mxu0 0.0
        %2120 = vmatpush1.msra.mxu0 0.0
        %2121 = vmatprep.subr.mxu0 0.0
        %2122 = vmatpush1.msra.mxu0 0.0
        %2123 = vmatprep.subr.mxu0 0.0
        %2124 = vmatpush1.msra.mxu0 0.0
        %2125 = vmatprep.subr.mxu0 0.0
        %2126 = vmatpush1.msra.mxu0 0.0
        %2127 = vmatprep.subr.mxu0 0.0
        %2128 = vmatpush1.msra.mxu0 %v2095
        %2129 = vmatprep.subr.mxu0 0.0
        %2130 = vmatpush2.msra.mxu0 0.0
        %2131 = vmatprep.subr.mxu0 0.0
        %2132 = vmatpush2.msra.mxu0 0.0
        %2133 = vmatprep.subr.mxu0 0.0
        %2134 = vmatpush2.msra.mxu0 0.0
        %2135 = vmatprep.subr.mxu0 0.0
        %2136 = vmatpush2.msra.mxu0 0.0
        %2137 = vmatprep.subr.mxu0 0.0
        %2138 = vmatpush2.msra.mxu0 0.0
        %2139 = vmatprep.subr.mxu0 0.0
        %2140 = vmatpush2.msra.mxu0 0.0
        %2141 = vmatprep.subr.mxu0 0.0
        %2142 = vmatpush2.msra.mxu0 0.0
        %2143 = vmatprep.subr.mxu0 0.0
        %2144 = vmatpush2.msra.mxu0 0.0
        %2145 = vmatprep.subr.mxu0 0.0
        %2146 = vmatpush2.msra.mxu0 0.0
        %2147 = vmatprep.subr.mxu0 0.0
        %2148 = vmatpush2.msra.mxu0 0.0
        %2149 = vmatprep.subr.mxu0 0.0
        %2150 = vmatpush2.msra.mxu0 0.0
        %2151 = vmatprep.subr.mxu0 0.0
        %2152 = vmatpush2.msra.mxu0 0.0
        %2153 = vmatprep.subr.mxu0 0.0
        %2154 = vmatpush2.msra.mxu0 0.0
        %2155 = vmatprep.subr.mxu0 0.0
        %2156 = vmatpush2.msra.mxu0 0.0
        %2157 = vmatprep.subr.mxu0 0.0
        %2158 = vmatpush2.msra.mxu0 0.0
        %2159 = vmatprep.subr.mxu0 0.0
        %2160 = vmatpush2.msra.mxu0 0.0
        %2161 = vmatprep.mubr.f32.mxu0 0.0
        %2162 = vmatmul.mubr.f32.gmra.mxu0 %v2091
        %v2163 = vpop.f32.mrf.mxu0
        %v2164 = vadd.f32 %v2088, %v2163
        %v2165 = vpop.f32.mrf.mxu0
        %2166 = vdwg.mxu0
        %v2167 = vxor.u32 %v2164, 2147483648
        %v2168 = vmul.f32 %v2167, 1.442695
        %v2169 = vpow.pop %v2168
        %v2170 = vadd.f32 %v2169, 1.0
        %v2171 = vrcp.pop %v2170
        %v2172 = vmul.f32 1.0, %v2171
        %2174 = vrot.lane.b32.xlu0 %v2172, 32
        %v2175 = vpop.permute.xlu0 %2174
        %2177 = vrot.lane.b32.xlu0 %v2172, 64
        %v2178 = vpop.permute.xlu0 %2177
        %2180 = vrot.lane.b32.xlu0 %v2172, 96
        %v2181 = vpop.permute.xlu0 %2180
        %v2183 = vsel %vm1999, %v2172, %v2175
        %vm2184 = vcmask 523264
        %v2185 = vsel %vm2184, %v2183, %v2178
        %vm2186 = vcmask 785408
        %v2187 = vsel %vm2186, %v2185, %v2181
        %v2188 = vlaneseq
        %v2189 = vshrl.u32 %v2188, 7
        %v2190 = vsub.s32 0, %v2189
        %v2191 = vrot.slane %v2187, %v2190
        %v2192 = vmul.f32 %v1912, %v2191
        %v2193 = vmul.f32 %v1914, %v2191
        %v2194 = vadd.f32 %v2192, %v1177
        %v2195 = vadd.f32 %v2193, %v1178
        %v2196 = vmax.f32 %v2194, 0.0
        %v2197 = vmax.f32 %v2195, 0.0
        %2198 = vst [vmem:[%s380] sm:$0xff] %v2196
        %2199 = vst [vmem:[%s380 + $0x8] sm:$0xff] %v2197
        %s2200 = sand.u32 %s249, 1
        %s2201 = scalar_lea.sflag [#allocation4], %s2200
        %s2202 = sand.u32 %s249, 1
        %s2203 = smul.addr %s2202, 16
        %s2204 = scalar_lea.vmem [#allocation7], %s2203
        // Predicated region
        $region69: #{tpu_custom_call.1} parent=59 // pred_check
          %p2205 = pneg %p259
        $region70: #{tpu_custom_call.1} parent=59 // pred_check_branch
          %2207 = sbr.rel (%p2205) target = $region72
        $region71: #{tpu_custom_call.1} parent=59 // pred_region
          %s2209 = ssub.s32 256, 256
          %2210 = vsyncadd %s2201, %s2209
          %s2211 = smul.addr %s26, 2
          %s2212 = smul.addr %s2211, 128
          %s2213 = scalar_lea.hbm %s10, %s2212
          %s2215 = sshll.u32 %s2204, 4
          %s2216 = int_to_ptr.vmem [resolvable:$true] %s2215
          %2218 = dma.vmem_to_hbm [thread:$0]  %s2216, 256, %s2213, %s2201
        $region72: #{tpu_custom_call.1} parent=59 // pred_fallthru
          _
      $region60: #{tpu_custom_call.1} parent=5 // pred_fallthru
        _
      %p2219 = scmp.le.s32.totalorder 2, %s21
      // Predicated region
      $region73: #{tpu_custom_call.1} parent=5 // pred_check
        %p2220 = pneg %p2219
      $region74: #{tpu_custom_call.1} parent=5 // pred_check_branch
        %2222 = sbr.rel (%p2220) target = $region76
      $region75: #{tpu_custom_call.1} parent=5 // pred_region
        %s2223 = ssub.s32 %s21, 2
        // Predicated region
        $region77: #{tpu_custom_call.1} parent=75 // pred_check
          %p2224 = pneg %p265
        $region78: #{tpu_custom_call.1} parent=75 // pred_check_branch
          %2226 = sbr.rel (%p2224) target = $region80
        $region79: #{tpu_custom_call.1} parent=75 // pred_region
          %s2227 = sand.u32 %s250, 1
          %s2228 = scalar_lea.sflag [#allocation4], %s2227
          %s2229 = sand.u32 %s250, 1
          %s2230 = smul.addr %s2229, 16
          %s2231 = scalar_lea.vmem [#allocation7], %s2230
          %2232 = dma.done %s2228, 256
        $region80: #{tpu_custom_call.1} parent=75 // pred_fallthru
          _
      $region76: #{tpu_custom_call.1} parent=5 // pred_fallthru
        _
    $region6: #{tpu_custom_call.1} parent=1 // loop_footer
      %s25 = sadd.s32 1, %s21
    $region7: #{tpu_custom_call.1} parent=1 // loop_footer_branch
      %20 = sbr.rel target = $region3
    $region8: #{tpu_custom_call.1} parent=1 // loop_exit
      _
    %2233 = vsyncpa [#allocation3], 1
    %s2234 = scalar_lea.sflag [#allocation3], 1
    %2235 = vsyncpa %s2234, 1
    %2236 = vsyncpa [#allocation6], 1
    %2237 = vsyncpa [#allocation4], 1
    %s2238 = scalar_lea.sflag [#allocation4], 1
    %2239 = vsyncpa %s2238, 1

</llo_original>
